<compile_context>
chip_gen: v5e
topology: v5e:2x2
jax: 0.10.0
libtpu: 0.0.40
codegen_flags: <defaults>
</compile_context>

<pallas_src>
import functools

import jax
import jax.numpy as jnp
from jax import lax
from jax.experimental import pallas as pl
from jax.experimental.pallas import tpu as pltpu


# Raise the scoped VMEM limit explicitly (defaults: 16 MiB v5e / 32 MiB v6e,v7x).
VMEM_LIMIT_BYTES = 64 * 1024 * 1024


def _cp(*sem):
    return pltpu.CompilerParams(dimension_semantics=sem,
                                vmem_limit_bytes=VMEM_LIMIT_BYTES)


# ------------------------------ in-kernel helpers ------------------------------


def _rms(x, w, eps):
    var = jnp.mean(x * x, axis=-1, keepdims=True)
    return x * lax.rsqrt(var + eps) * w


# ---------------------------------------------------------------------------
# Kernel 1: masked token-RMSNorm + hidden-RMSNorm + input_proj GEMM (fused)
#   concat([p, e]) @ W_in  ==  p @ W_in[:H] + e @ W_in[H:]
#   Norms are computed once per row tile (column j == 0) and cached in VMEM.
# ---------------------------------------------------------------------------


def _prologue_kernel(emb_ref, prev_ref, tokw_ref, hidw_ref, wp_ref, we_ref,
                     o_ref, e_sc, p_sc, *, eps):
    @pl.when(pl.program_id(1) == 0)
    def _():
        e_sc[...] = _rms(emb_ref[...].astype(jnp.float32),
                         tokw_ref[...].astype(jnp.float32), eps).astype(e_sc.dtype)
        p_sc[...] = _rms(prev_ref[...].astype(jnp.float32),
                         hidw_ref[...].astype(jnp.float32), eps).astype(p_sc.dtype)

    acc = jnp.dot(p_sc[...], wp_ref[...], preferred_element_type=jnp.float32)
    acc = acc + jnp.dot(e_sc[...], we_ref[...], preferred_element_type=jnp.float32)
    o_ref[...] = acc.astype(o_ref.dtype)


def prologue_proj(emb, prev, tok_w, hid_w, w_in, *, eps, tm, tn, out_dtype):
    T, H = emb.shape
    assert T % tm == 0 and H % tn == 0 and w_in.shape == (2 * H, H)
    return pl.pallas_call(
        functools.partial(_prologue_kernel, eps=eps),
        out_shape=jax.ShapeDtypeStruct((T, H), out_dtype),
        grid=(T // tm, H // tn),
        in_specs=[
            pl.BlockSpec((tm, H), lambda i, j: (i, 0)),     # masked embeds rows
            pl.BlockSpec((tm, H), lambda i, j: (i, 0)),     # prev hidden rows
            pl.BlockSpec((1, H), lambda i, j: (0, 0)),      # token_layernorm weight
            pl.BlockSpec((1, H), lambda i, j: (0, 0)),      # hidden_layernorm weight
            pl.BlockSpec((H, tn), lambda i, j: (0, j)),     # W_in rows [0, H)  (prev half)
            pl.BlockSpec((H, tn), lambda i, j: (1, j)),     # W_in rows [H, 2H) (embed half)
        ],
        out_specs=pl.BlockSpec((tm, tn), lambda i, j: (i, j)),
        scratch_shapes=[pltpu.VMEM((tm, H), out_dtype),     # cached RMSNorm(embeds)
                        pltpu.VMEM((tm, H), out_dtype)],    # cached RMSNorm(prev)
        compiler_params=_cp("parallel", "arbitrary"),
    )(emb, prev, tok_w.reshape(1, -1), hid_w.reshape(1, -1), w_in, w_in)


# ---------------------------------------------------------------------------
# Kernel 2: input_layernorm + fused QKV GEMM + bias + RoPE epilogue
#   Column grid axis iterates heads (block width == head_dim).  The 1/sqrt(D)
#   attention scale is pre-folded into the Q columns of W_qkv / b_qkv, and RoPE is
#   applied here (once per element) so the flash-attention inner loop is RoPE-free.
# ---------------------------------------------------------------------------


def _qkv_rope_kernel(x_ref, nw_ref, w_ref, b_ref, cos_ref, sin_ref, o_ref, xn_sc,
                     *, eps, n_rope_heads):
    j = pl.program_id(1)

    @pl.when(j == 0)
    def _():
        xn_sc[...] = _rms(x_ref[...].astype(jnp.float32),
                          nw_ref[...].astype(jnp.float32), eps).astype(xn_sc.dtype)

    acc = jnp.dot(xn_sc[...], w_ref[...], preferred_element_type=jnp.float32)
    acc = acc + b_ref[...].astype(jnp.float32)

    @pl.when(j < n_rope_heads)                       # Q and K heads: apply RoPE
    def _():
        d = acc.shape[-1]
        roped = (acc * cos_ref[...].astype(jnp.float32)
                 + pltpu.roll(acc, shift=d // 2, axis=1)
                 * sin_ref[...].astype(jnp.float32))
        o_ref[...] = roped.astype(o_ref.dtype)

    @pl.when(j >= n_rope_heads)                      # V heads: passthrough
    def _():
        o_ref[...] = acc.astype(o_ref.dtype)


def qkv_proj_rope(x, norm_w, w, b, cos, sin_signed, *, eps, head_dim,
                  n_rope_heads, tm):
    T, H = x.shape
    N = w.shape[1]
    D = head_dim
    assert N % D == 0 and T % tm == 0 and D % 128 == 0
    n_heads_total = N // D
    return pl.pallas_call(
        functools.partial(_qkv_rope_kernel, eps=eps, n_rope_heads=n_rope_heads),
        out_shape=jax.ShapeDtypeStruct((T, N), x.dtype),
        grid=(T // tm, n_heads_total),
        in_specs=[
            pl.BlockSpec((tm, H), lambda i, j: (i, 0)),
            pl.BlockSpec((1, H), lambda i, j: (0, 0)),
            pl.BlockSpec((H, D), lambda i, j: (0, j)),
            pl.BlockSpec((1, D), lambda i, j: (0, j)),
            pl.BlockSpec((tm, D), lambda i, j: (i, 0)),   # cos rows for this tile
            pl.BlockSpec((tm, D), lambda i, j: (i, 0)),   # sign-folded sin rows
        ],
        out_specs=pl.BlockSpec((tm, D), lambda i, j: (i, j)),
        scratch_shapes=[pltpu.VMEM((tm, H), x.dtype)],    # cached input_layernorm(x)
        compiler_params=_cp("parallel", "arbitrary"),
    )(x, norm_w.reshape(1, -1), w, b.reshape(1, -1), cos, sin_signed)


# ---------------------------------------------------------------------------
# Kernel 3: flash-style causal attention, one GQA group of Q heads per grid step.
#   Q/K/V are read straight from the lane-dense fused-QKV buffer via index_map,
#   the shared K/V tile is fetched once per kv step and reused for every Q head of
#   the group, above-diagonal kv blocks are skipped (and their DMA elided via
#   jnp.minimum clamping), the tril mask is built only on the diagonal block.
# ---------------------------------------------------------------------------


def _flash_attn_kernel(q_ref, k_ref, v_ref, o_ref, m_sc, l_sc, acc_sc,
                       *, tq, tk, group, head_dim):
    qi = pl.program_id(1)
    ki = pl.program_id(2)
    D = head_dim

    @pl.when(ki == 0)
    def _():
        m_sc[...] = jnp.full_like(m_sc, -jnp.inf)
        l_sc[...] = jnp.zeros_like(l_sc)
        acc_sc[...] = jnp.zeros_like(acc_sc)

    def update(on_diagonal):
        k = k_ref[...]                                    # (tk, D) bf16 (RoPE'd)
        v = v_ref[...].astype(jnp.float32)                # TODO(synk): keep bf16 + bf16 P in production
        for g in range(group):
            q = q_ref[:, g * D:(g + 1) * D]               # bf16, RoPE'd + pre-scaled
            # transposed-RHS matmul: contract last dims, no K transpose materialized
            s = lax.dot_general(q, k, (((1,), (1,)), ((), ())),
                                preferred_element_type=jnp.float32)   # (tq, tk)
            if on_diagonal:                               # tq == tk -> local tril mask
                row = lax.broadcasted_iota(jnp.int32, (tq, tk), 0)
                col = lax.broadcasted_iota(jnp.int32, (tq, tk), 1)
                s = jnp.where(col <= row, s, -1e30)
            m_prev = m_sc[:, g:g + 1]
            m_new = jnp.maximum(m_prev, jnp.max(s, axis=-1, keepdims=True))
            alpha = jnp.exp(m_prev - m_new)
            p = jnp.exp(s - m_new)
            l_sc[:, g:g + 1] = alpha * l_sc[:, g:g + 1] + jnp.sum(p, -1, keepdims=True)
            acc_sc[:, g * D:(g + 1) * D] = (
                alpha * acc_sc[:, g * D:(g + 1) * D]
                + jnp.dot(p, v, preferred_element_type=jnp.float32))
            m_sc[:, g:g + 1] = m_new

    @pl.when(ki == qi)          # diagonal block: needs the causal mask
    def _():
        update(True)

    @pl.when(ki < qi)           # strictly below the diagonal: unmasked
    def _():
        update(False)

    @pl.when(ki == pl.num_programs(2) - 1)
    def _():
        for g in range(group):
            # approx=False keeps the tight tolerance of the reference check;
            # use approx=True (EUP vrcp, effectively free) in production.
            inv_l = pl.reciprocal(l_sc[:, g:g + 1], approx=False)
            o_ref[:, g * D:(g + 1) * D] = (
                acc_sc[:, g * D:(g + 1) * D] * inv_l).astype(o_ref.dtype)


def flash_attention(qkv, *, num_heads, num_kv_heads, head_dim, tq, tk):
    T = qkv.shape[0]
    nH, nKV, D = num_heads, num_kv_heads, head_dim
    assert tq == tk, "causal block-skip / diagonal-only mask assume tq == tk"
    assert T % tq == 0 and nH % nKV == 0
    group = nH // nKV
    kernel = functools.partial(_flash_attn_kernel, tq=tq, tk=tk,
                               group=group, head_dim=D)
    return pl.pallas_call(
        kernel,
        out_shape=jax.ShapeDtypeStruct((T, nH * D), qkv.dtype),
        grid=(nKV, T // tq, T // tk),
        in_specs=[
            # Q: whole GQA group (column-block unit = group*D); constant over ki,
            # so it is only DMA'd once per (g, qi).
            pl.BlockSpec((tq, group * D), lambda g, qi, ki: (qi, g)),
            # K / V: one shared kv head per group (column-block unit = D).  The row
            # index is clamped so causally-skipped blocks re-reference the previous
            # block and Pallas elides the DMA.
            pl.BlockSpec((tk, D),
                         lambda g, qi, ki: (jnp.minimum(ki, qi), nH + g)),
            pl.BlockSpec((tk, D),
                         lambda g, qi, ki: (jnp.minimum(ki, qi), nH + nKV + g)),
        ],
        out_specs=pl.BlockSpec((tq, group * D), lambda g, qi, ki: (qi, g)),
        scratch_shapes=[
            pltpu.VMEM((tq, group), jnp.float32),          # running max (per head)
            pltpu.VMEM((tq, group), jnp.float32),          # running denom (per head)
            pltpu.VMEM((tq, group * D), jnp.float32),      # running numerator
        ],
        compiler_params=_cp("parallel", "parallel", "arbitrary"),
    )(qkv, qkv, qkv)


# ---------------------------------------------------------------------------
# Kernel 4: o_proj GEMM + residual add (fused epilogue)
# ---------------------------------------------------------------------------


def _matmul_residual_kernel(x_ref, w_ref, res_ref, o_ref):
    acc = jnp.dot(x_ref[...], w_ref[...], preferred_element_type=jnp.float32)
    o_ref[...] = (acc + res_ref[...].astype(jnp.float32)).astype(o_ref.dtype)


def matmul_residual(x, w, res, *, tm, tn):
    T, K = x.shape
    N = w.shape[1]
    assert T % tm == 0 and N % tn == 0
    return pl.pallas_call(
        _matmul_residual_kernel,
        out_shape=jax.ShapeDtypeStruct((T, N), x.dtype),
        grid=(T // tm, N // tn),
        in_specs=[
            pl.BlockSpec((tm, K), lambda i, j: (i, 0)),
            pl.BlockSpec((K, tn), lambda i, j: (0, j)),
            pl.BlockSpec((tm, tn), lambda i, j: (i, j)),
        ],
        out_specs=pl.BlockSpec((tm, tn), lambda i, j: (i, j)),
        compiler_params=_cp("parallel", "parallel"),
    )(x, w, res)


# ---------------------------------------------------------------------------
# Kernel 5: fused MLP
#   post_attention_layernorm (cached in VMEM at t == 0)
#   -> gate/up GEMM tiles + SiLU(gate)*up
#   -> down_proj reduction over intermediate tiles (f32 accumulator, 'arbitrary')
#   -> + residual, final_layernorm (finalize epilogue)
# ---------------------------------------------------------------------------


def _mlp_kernel(x_ref, postw_ref, finalw_ref, wg_ref, wu_ref, wd_ref, o_ref,
                acc_sc, xn_sc, *, eps, compute_dtype):
    t = pl.program_id(1)

    @pl.when(t == 0)
    def _():
        acc_sc[...] = jnp.zeros_like(acc_sc)
        xn_sc[...] = _rms(x_ref[...].astype(jnp.float32),
                          postw_ref[...].astype(jnp.float32), eps).astype(xn_sc.dtype)

    xn = xn_sc[...]
    g = jnp.dot(xn, wg_ref[...], preferred_element_type=jnp.float32)
    u = jnp.dot(xn, wu_ref[...], preferred_element_type=jnp.float32)
    act = (g * jax.nn.sigmoid(g) * u).astype(compute_dtype)   # SiLU(gate) * up
    acc_sc[...] += jnp.dot(act, wd_ref[...], preferred_element_type=jnp.float32)

    @pl.when(t == pl.num_programs(1) - 1)
    def _():
        h = x_ref[...].astype(jnp.float32) + acc_sc[...]       # residual + mlp_out
        o_ref[...] = _rms(h, finalw_ref[...].astype(jnp.float32),
                          eps).astype(o_ref.dtype)


def fused_mlp(x, post_w, final_w, w_gate, w_up, w_down, *, eps, tm, ti,
              compute_dtype, out_dtype=jnp.float32):
    T, H = x.shape
    inter = w_gate.shape[1]
    assert T % tm == 0 and inter % ti == 0
    return pl.pallas_call(
        functools.partial(_mlp_kernel, eps=eps, compute_dtype=compute_dtype),
        out_shape=jax.ShapeDtypeStruct((T, H), out_dtype),
        grid=(T // tm, inter // ti),
        in_specs=[
            pl.BlockSpec((tm, H), lambda i, t: (i, 0)),
            pl.BlockSpec((1, H), lambda i, t: (0, 0)),
            pl.BlockSpec((1, H), lambda i, t: (0, 0)),
            pl.BlockSpec((H, ti), lambda i, t: (0, t)),
            pl.BlockSpec((H, ti), lambda i, t: (0, t)),
            pl.BlockSpec((ti, H), lambda i, t: (t, 0)),
        ],
        out_specs=pl.BlockSpec((tm, H), lambda i, t: (i, 0)),
        scratch_shapes=[
            pltpu.VMEM((tm, H), jnp.float32),      # down_proj f32 accumulator
            pltpu.VMEM((tm, H), compute_dtype),    # cached post-ln(x) row tile
        ],
        compiler_params=_cp("parallel", "arbitrary"),
    )(x, post_w.reshape(1, -1), final_w.reshape(1, -1), w_gate, w_up, w_down)


# ------------------------------ model wrapper ------------------------------


def make_config():
    # Small but lane-friendly: every kernel's lane axis is a multiple of 128,
    # so stores are full vst (no masked partial stores). nKV < nH exercises GQA.
    return dict(hidden=256, num_heads=2, num_kv_heads=1, head_dim=128,
                intermediate=512, vocab=512, eps=1e-6, rope_theta=10000.0)


def init_params(key, cfg):
    H, I, V = cfg['hidden'], cfg['intermediate'], cfg['vocab']
    nH, nKV, D = cfg['num_heads'], cfg['num_kv_heads'], cfg['head_dim']
    ks = jax.random.split(key, 13)

    def nrm(k, shape, scale=0.02):
        return (scale * jax.random.normal(k, shape)).astype(jnp.float32)

    return dict(
        embed=nrm(ks[0], (V, H), 0.05),
        tok_ln_w=1.0 + nrm(ks[1], (H,)),
        hid_ln_w=1.0 + nrm(ks[2], (H,)),
        w_in=nrm(ks[3], (2 * H, H)),
        in_ln_w=1.0 + nrm(ks[4], (H,)),
        w_qkv=nrm(ks[5], (H, (nH + 2 * nKV) * D)),
        b_qkv=nrm(ks[6], ((nH + 2 * nKV) * D,)),
        w_o=nrm(ks[7], (nH * D, H)),
        post_ln_w=1.0 + nrm(ks[8], (H,)),
        w_gate=nrm(ks[9], (H, I)),
        w_up=nrm(ks[10], (H, I)),
        w_down=nrm(ks[11], (I, H)),
        final_ln_w=1.0 + nrm(ks[12], (H,)),
    )


def prepare_params(params, cfg, compute_dtype=jnp.bfloat16):
    """Fold 1/sqrt(D) into the Q columns of the QKV projection and cast GEMM weights
    to the compute dtype.  RMSNorm weights and the QKV bias stay f32."""
    nH, D = cfg['num_heads'], cfg['head_dim']
    scale = 1.0 / (D ** 0.5)
    qcols = nH * D
    w_qkv = jnp.concatenate([params['w_qkv'][:, :qcols] * scale,
                             params['w_qkv'][:, qcols:]], axis=1)
    b_qkv = jnp.concatenate([params['b_qkv'][:qcols] * scale,
                             params['b_qkv'][qcols:]], axis=0).astype(jnp.float32)
    prep = dict(params)
    prep['w_qkv'] = w_qkv
    prep['b_qkv'] = b_qkv
    for k in ('embed', 'w_in', 'w_qkv', 'w_o', 'w_gate', 'w_up', 'w_down'):
        prep[k] = prep[k].astype(compute_dtype)
    return prep


def rope_tables(positions, head_dim, theta):
    inv_freq = 1.0 / (theta ** (jnp.arange(0, head_dim, 2, dtype=jnp.float32) / head_dim))
    freqs = positions.astype(jnp.float32)[:, None] * inv_freq[None, :]   # (T, D/2)
    cos = jnp.concatenate([jnp.cos(freqs), jnp.cos(freqs)], axis=-1)
    sin = jnp.concatenate([jnp.sin(freqs), jnp.sin(freqs)], axis=-1)
    return cos, sin


def embed_and_mask(prep, input_ids, positions):
    # embed_tokens gather + "inputs_embeds[positions == 0] = 0" stay in JAX glue.
    emb = prep['embed'][input_ids]
    return jnp.where((positions == 0)[:, None], jnp.zeros((), emb.dtype), emb)


def mimo_mtp_forward(prep, input_ids, positions, previous_hidden_states, cfg,
                     compute_dtype=jnp.bfloat16):
    nH, nKV, D = cfg['num_heads'], cfg['num_kv_heads'], cfg['head_dim']
    eps = cfg['eps']
    T = input_ids.shape[0]

    # Tile plan: 128-class tiles (>= 2 parallel row tiles at T=256 so both v7x TCs
    # are fed).  On v6e raise tm/tq/tk/ti to 256-class; on v7x halve ti relative to
    # the v6e plan (64 MiB VMEM); v5e stays at 128-multiples.
    tm = min(128, T)
    tn = min(128, cfg['hidden'])
    tq = tk = min(128, T)
    ti = min(256, cfg['intermediate'])

    emb = embed_and_mask(prep, input_ids, positions)                      # (T, H) bf16
    prev = previous_hidden_states.astype(compute_dtype)

    # --- masked token norm + hidden norm + input_proj (1 kernel) ---
    h = prologue_proj(emb, prev, prep['tok_ln_w'], prep['hid_ln_w'], prep['w_in'],
                      eps=eps, tm=tm, tn=tn, out_dtype=compute_dtype)     # (T, H)

    # --- RoPE tables; rotate_half sign folded into sin so the kernel uses roll ---
    cos, sin = rope_tables(positions, D, cfg['rope_theta'])
    sin_signed = jnp.concatenate([-sin[:, :D // 2], sin[:, D // 2:]], axis=-1)

    # --- input_layernorm + fused QKV projection (scale pre-folded) + RoPE (1 kernel) ---
    qkv = qkv_proj_rope(h, prep['in_ln_w'], prep['w_qkv'], prep['b_qkv'],
                        cos, sin_signed, eps=eps, head_dim=D,
                        n_rope_heads=nH + nKV, tm=tm)        # (T, (nH+2nKV)*D) bf16

    # --- flash attention: GQA group per grid step, causal skip + DMA clamp (1 kernel) ---
    attn = flash_attention(qkv, num_heads=nH, num_kv_heads=nKV, head_dim=D,
                           tq=tq, tk=tk)                                  # (T, nH*D)

    # --- o_proj + residual add (1 kernel) ---
    x = matmul_residual(attn, prep['w_o'], h, tm=tm, tn=tn)               # (T, H)

    # --- post_ln + gate/up + SwiGLU + down + residual + final_ln (1 kernel) ---
    out = fused_mlp(x, prep['post_ln_w'], prep['final_ln_w'],
                    prep['w_gate'], prep['w_up'], prep['w_down'],
                    eps=eps, tm=tm, ti=ti, compute_dtype=compute_dtype)   # (T, H) f32
    return out
    # TODO(synk): compute_logits / LogitsProcessor and vLLM KV-cache plumbing are not
    # part of MiMoMTP.forward and are intentionally not implemented.


# ------------------------------ pure-JAX reference ------------------------------
# Mirrors the kernel's bf16 quantization points so the comparison stays tight while
# computing the module's math with standard (non-flash) ops.


def ref_forward(prep, input_ids, positions, previous_hidden_states, cfg,
                compute_dtype=jnp.bfloat16):
    nH, nKV, D = cfg['num_heads'], cfg['num_kv_heads'], cfg['head_dim']
    eps = cfg['eps']
    T = input_ids.shape[0]
    cd = compute_dtype
    f32 = jnp.float32

    def rms(x, w):
        var = jnp.mean(x * x, axis=-1, keepdims=True)
        return x * lax.rsqrt(var + eps) * w

    emb = embed_and_mask(prep, input_ids, positions).astype(f32)
    prev = previous_hidden_states.astype(cd).astype(f32)

    e = rms(emb, prep['tok_ln_w']).astype(cd)
    p = rms(prev, prep['hid_ln_w']).astype(cd)
    h = jnp.dot(jnp.concatenate([p, e], axis=-1), prep['w_in'],
                preferred_element_type=f32).astype(cd)

    hn = rms(h.astype(f32), prep['in_ln_w']).astype(cd)
    qkv = jnp.dot(hn, prep['w_qkv'], preferred_element_type=f32) + prep['b_qkv']

    cos, sin = rope_tables(positions, D, cfg['rope_theta'])

    def rope(x):                                         # x: (T, n, D), f32
        x1, x2 = x[..., :D // 2], x[..., D // 2:]
        return (x * cos[:, None, :]
                + jnp.concatenate([-x2, x1], -1) * sin[:, None, :])

    n_rope = nH + nKV
    roped = rope(qkv[:, :n_rope * D].reshape(T, n_rope, D)).reshape(T, n_rope * D)
    qkv = jnp.concatenate([roped, qkv[:, n_rope * D:]], axis=-1).astype(cd)

    q = qkv[:, :nH * D].reshape(T, nH, D).transpose(1, 0, 2)
    k = qkv[:, nH * D:(nH + nKV) * D].reshape(T, nKV, D).transpose(1, 0, 2)
    v = qkv[:, (nH + nKV) * D:].reshape(T, nKV, D).transpose(1, 0, 2)
    if nKV != nH:
        k = jnp.repeat(k, nH // nKV, axis=0)
        v = jnp.repeat(v, nH // nKV, axis=0)

    # Note: the 1/sqrt(D) scale is already folded into prep['w_qkv'] / prep['b_qkv'].
    scores = jnp.einsum('htd,hsd->hts', q, k, preferred_element_type=f32)
    mask = jnp.tril(jnp.ones((T, T), bool))[None]
    scores = jnp.where(mask, scores, -1e30)
    pattn = jax.nn.softmax(scores, axis=-1)
    attn = jnp.einsum('hts,hsd->htd', pattn, v.astype(f32))
    attn = attn.transpose(1, 0, 2).reshape(T, nH * D).astype(cd)

    x = (jnp.dot(attn, prep['w_o'], preferred_element_type=f32)
         + h.astype(f32)).astype(cd)

    xn = rms(x.astype(f32), prep['post_ln_w']).astype(cd)
    g = jnp.dot(xn, prep['w_gate'], preferred_element_type=f32)
    u = jnp.dot(xn, prep['w_up'], preferred_element_type=f32)
    act = (g * jax.nn.sigmoid(g) * u).astype(cd)
    mlp_out = jnp.dot(act, prep['w_down'], preferred_element_type=f32)
    return rms(x.astype(f32) + mlp_out, prep['final_ln_w'])


# ----------------------------------- main -----------------------------------


if __name__ == "__main__":
    cfg = make_config()
    key = jax.random.PRNGKey(0)
    k_param, k_ids, k_prev = jax.random.split(key, 3)

    T = 256
    params = init_params(k_param, cfg)
    prep = prepare_params(params, cfg, compute_dtype=jnp.bfloat16)

    input_ids = jax.random.randint(k_ids, (T,), 0, cfg['vocab'], dtype=jnp.int32)
    positions = jnp.arange(T, dtype=jnp.int32)                   # includes position 0
    previous_hidden_states = jax.random.normal(
        k_prev, (T, cfg['hidden']), dtype=jnp.float32)

    out = mimo_mtp_forward(prep, input_ids, positions, previous_hidden_states, cfg,
                           compute_dtype=jnp.bfloat16)
    out = jax.block_until_ready(out)

    ref = ref_forward(prep, input_ids, positions, previous_hidden_states, cfg,
                      compute_dtype=jnp.bfloat16)
    assert out.shape == (T, cfg['hidden'])
    max_err = float(jnp.max(jnp.abs(out - ref)))
    assert jnp.allclose(out, ref, atol=5e-3, rtol=5e-3), f"max abs err {max_err}"

    print("KERNEL_OK")
</pallas_src>

<mosaic_0001>
module attributes {stable_mosaic.version = 11 : i64} {
  func.func @_prologue_kernel(%arg0: i32, %arg1: i32, %arg2: memref<128x256xbf16, #tpu.memory_space<vmem>>, %arg3: memref<128x256xbf16, #tpu.memory_space<vmem>>, %arg4: memref<1x256xf32, #tpu.memory_space<vmem>>, %arg5: memref<1x256xf32, #tpu.memory_space<vmem>>, %arg6: memref<256x128xbf16, #tpu.memory_space<vmem>>, %arg7: memref<256x128xbf16, #tpu.memory_space<vmem>>, %arg8: memref<128x128xbf16, #tpu.memory_space<vmem>>, %arg9: memref<128x256xbf16, #tpu.memory_space<vmem>>, %arg10: memref<128x256xbf16, #tpu.memory_space<vmem>>) attributes {dimension_semantics = [#tpu.dimension_semantics<parallel>, #tpu.dimension_semantics<arbitrary>], iteration_bounds = array<i64: 2, 2>, scalar_prefetch = 0 : i64, scratch_operands = 2 : i64, tpu.core_type = #tpu.core_type<tc>, window_params = [{transform_indices = @transform_0, window_bounds = array<i64: 128, 256>}, {transform_indices = @transform_1, window_bounds = array<i64: 128, 256>}, {pipeline_mode = #tpu.pipeline_mode<synchronous>, transform_indices = @transform_2, window_bounds = array<i64: 1, 256>}, {pipeline_mode = #tpu.pipeline_mode<synchronous>, transform_indices = @transform_3, window_bounds = array<i64: 1, 256>}, {transform_indices = @transform_4, window_bounds = array<i64: 256, 128>}, {transform_indices = @transform_5, window_bounds = array<i64: 256, 128>}, {transform_indices = @transform_6, window_bounds = array<i64: 128, 128>}]} {
    %c0_i32 = arith.constant 0 : i32
    %0 = arith.cmpi eq, %arg1, %c0_i32 : i32
    %1 = arith.extui %0 : i1 to i32
    %c0_i32_0 = arith.constant 0 : i32
    %2 = arith.cmpi ne, %1, %c0_i32_0 : i32
    scf.if %2 {
      %c0_11 = arith.constant 0 : index
      %c0_12 = arith.constant 0 : index
      %12 = vector.load %arg2[%c0_11, %c0_12] : memref<128x256xbf16, #tpu.memory_space<vmem>>, vector<128x256xbf16>
      %13 = arith.extf %12 : vector<128x256xbf16> to vector<128x256xf32>
      %c0_13 = arith.constant 0 : index
      %c0_14 = arith.constant 0 : index
      %14 = vector.load %arg4[%c0_13, %c0_14] : memref<1x256xf32, #tpu.memory_space<vmem>>, vector<1x256xf32>
      %15 = arith.mulf %13, %13 : vector<128x256xf32>
      %cst_15 = arith.constant dense<0.000000e+00> : vector<128xf32>
      %16 = vector.multi_reduction <add>, %15, %cst_15 [1] : vector<128x256xf32> to vector<128xf32>
      %17 = vector.shape_cast %16 : vector<128xf32> to vector<128x1xf32>
      %cst_16 = arith.constant 2.560000e+02 : f32
      %18 = vector.broadcast %cst_16 : f32 to vector<128x1xf32>
      %19 = arith.divf %17, %18 : vector<128x1xf32>
      %cst_17 = arith.constant 9.99999997E-7 : f32
      %20 = vector.broadcast %cst_17 : f32 to vector<128x1xf32>
      %21 = arith.addf %19, %20 : vector<128x1xf32>
      %22 = math.rsqrt %21 : vector<128x1xf32>
      %23 = vector.broadcast %22 : vector<128x1xf32> to vector<128x256xf32>
      %24 = arith.mulf %13, %23 : vector<128x256xf32>
      %25 = vector.broadcast %14 : vector<1x256xf32> to vector<128x256xf32>
      %26 = arith.mulf %24, %25 : vector<128x256xf32>
      %27 = arith.truncf %26 : vector<128x256xf32> to vector<128x256xbf16>
      %c0_18 = arith.constant 0 : index
      %c0_19 = arith.constant 0 : index
      %28 = vector.load %arg9[%c0_18, %c0_19] : memref<128x256xbf16, #tpu.memory_space<vmem>>, vector<128x256xbf16>
      tpu.vector_store %arg9[%c0_18, %c0_19], %27 {strides = array<i32>} : memref<128x256xbf16, #tpu.memory_space<vmem>>, vector<128x256xbf16>,
      %c0_20 = arith.constant 0 : index
      %c0_21 = arith.constant 0 : index
      %29 = vector.load %arg3[%c0_20, %c0_21] : memref<128x256xbf16, #tpu.memory_space<vmem>>, vector<128x256xbf16>
      %30 = arith.extf %29 : vector<128x256xbf16> to vector<128x256xf32>
      %c0_22 = arith.constant 0 : index
      %c0_23 = arith.constant 0 : index
      %31 = vector.load %arg5[%c0_22, %c0_23] : memref<1x256xf32, #tpu.memory_space<vmem>>, vector<1x256xf32>
      %32 = arith.mulf %30, %30 : vector<128x256xf32>
      %cst_24 = arith.constant dense<0.000000e+00> : vector<128xf32>
      %33 = vector.multi_reduction <add>, %32, %cst_24 [1] : vector<128x256xf32> to vector<128xf32>
      %34 = vector.shape_cast %33 : vector<128xf32> to vector<128x1xf32>
      %cst_25 = arith.constant 2.560000e+02 : f32
      %35 = vector.broadcast %cst_25 : f32 to vector<128x1xf32>
      %36 = arith.divf %34, %35 : vector<128x1xf32>
      %cst_26 = arith.constant 9.99999997E-7 : f32
      %37 = vector.broadcast %cst_26 : f32 to vector<128x1xf32>
      %38 = arith.addf %36, %37 : vector<128x1xf32>
      %39 = math.rsqrt %38 : vector<128x1xf32>
      %40 = vector.broadcast %39 : vector<128x1xf32> to vector<128x256xf32>
      %41 = arith.mulf %30, %40 : vector<128x256xf32>
      %42 = vector.broadcast %31 : vector<1x256xf32> to vector<128x256xf32>
      %43 = arith.mulf %41, %42 : vector<128x256xf32>
      %44 = arith.truncf %43 : vector<128x256xf32> to vector<128x256xbf16>
      %c0_27 = arith.constant 0 : index
      %c0_28 = arith.constant 0 : index
      %45 = vector.load %arg10[%c0_27, %c0_28] : memref<128x256xbf16, #tpu.memory_space<vmem>>, vector<128x256xbf16>
      tpu.vector_store %arg10[%c0_27, %c0_28], %44 {strides = array<i32>} : memref<128x256xbf16, #tpu.memory_space<vmem>>, vector<128x256xbf16>,
    } else {
    }
    %c0 = arith.constant 0 : index
    %c0_1 = arith.constant 0 : index
    %3 = vector.load %arg10[%c0, %c0_1] : memref<128x256xbf16, #tpu.memory_space<vmem>>, vector<128x256xbf16>
    %c0_2 = arith.constant 0 : index
    %c0_3 = arith.constant 0 : index
    %4 = vector.load %arg6[%c0_2, %c0_3] : memref<256x128xbf16, #tpu.memory_space<vmem>>, vector<256x128xbf16>
    %cst = arith.constant dense<0.000000e+00> : vector<128x128xf32>
    %5 = tpu.matmul %3, %4, %cst {dimension_numbers = #tpu.dot_dimension_numbers<[1], [0], [0], [1], [0, 0, 1, 1], [], []>} : vector<128x256xbf16>, vector<256x128xbf16>, vector<128x128xf32> -> vector<128x128xf32>
    %c0_4 = arith.constant 0 : index
    %c0_5 = arith.constant 0 : index
    %6 = vector.load %arg9[%c0_4, %c0_5] : memref<128x256xbf16, #tpu.memory_space<vmem>>, vector<128x256xbf16>
    %c0_6 = arith.constant 0 : index
    %c0_7 = arith.constant 0 : index
    %7 = vector.load %arg7[%c0_6, %c0_7] : memref<256x128xbf16, #tpu.memory_space<vmem>>, vector<256x128xbf16>
    %cst_8 = arith.constant dense<0.000000e+00> : vector<128x128xf32>
    %8 = tpu.matmul %6, %7, %cst_8 {dimension_numbers = #tpu.dot_dimension_numbers<[1], [0], [0], [1], [0, 0, 1, 1], [], []>} : vector<128x256xbf16>, vector<256x128xbf16>, vector<128x128xf32> -> vector<128x128xf32>
    %9 = arith.addf %5, %8 : vector<128x128xf32>
    %10 = arith.truncf %9 : vector<128x128xf32> to vector<128x128xbf16>
    %c0_9 = arith.constant 0 : index
    %c0_10 = arith.constant 0 : index
    %11 = vector.load %arg8[%c0_9, %c0_10] : memref<128x128xbf16, #tpu.memory_space<vmem>>, vector<128x128xbf16>
    tpu.vector_store %arg8[%c0_9, %c0_10], %10 {strides = array<i32>} : memref<128x128xbf16, #tpu.memory_space<vmem>>, vector<128x128xbf16>,
    return
  }
  func.func @transform_0(%arg0: i32, %arg1: i32) -> (i32, i32) {
    %c0_i32 = arith.constant 0 : i32
    %c0_i32_0 = arith.constant 0 : i32
    return %arg0, %c0_i32 : i32, i32
  }
  func.func @transform_1(%arg0: i32, %arg1: i32) -> (i32, i32) {
    %c0_i32 = arith.constant 0 : i32
    %c0_i32_0 = arith.constant 0 : i32
    return %arg0, %c0_i32 : i32, i32
  }
  func.func @transform_2(%arg0: i32, %arg1: i32) -> (i32, i32) {
    %c0_i32 = arith.constant 0 : i32
    %c0_i32_0 = arith.constant 0 : i32
    %c0_i32_1 = arith.constant 0 : i32
    return %c0_i32, %c0_i32_0 : i32, i32
  }
  func.func @transform_3(%arg0: i32, %arg1: i32) -> (i32, i32) {
    %c0_i32 = arith.constant 0 : i32
    %c0_i32_0 = arith.constant 0 : i32
    %c0_i32_1 = arith.constant 0 : i32
    return %c0_i32, %c0_i32_0 : i32, i32
  }
  func.func @transform_4(%arg0: i32, %arg1: i32) -> (i32, i32) {
    %c0_i32 = arith.constant 0 : i32
    %c0_i32_0 = arith.constant 0 : i32
    return %c0_i32, %arg1 : i32, i32
  }
  func.func @transform_5(%arg0: i32, %arg1: i32) -> (i32, i32) {
    %c1_i32 = arith.constant 1 : i32
    %c0_i32 = arith.constant 0 : i32
    return %c1_i32, %arg1 : i32, i32
  }
  func.func @transform_6(%arg0: i32, %arg1: i32) -> (i32, i32) {
    %c0_i32 = arith.constant 0 : i32
    return %arg0, %arg1 : i32, i32
  }
}

</mosaic_0001>

<llo_original>
// kernel: tpu_custom_call.1
$region0: #{tpu_custom_call.1}
  #allocation0 [shape = 'u32[]', space=smem, size = 0x4, offset = 0x4, fixed_abs, tag = 'smem constant byte address 0x4 - core index']
  #allocation1 [shape = 'u32[72,128]{1,0:T(1,128)}', space=vmem, size = 0x9000, scoped, tag = 'internal scratch']
  #allocation2 [shape = 'bf16[128,256]{1,0:T(8,128)(2,1)}', space=vmem, size = 0x10000, scoped, tag = 'scratch operand']
  #allocation3 [shape = 'bf16[128,256]{1,0:T(8,128)(2,1)}', space=vmem, size = 0x10000, scoped, tag = 'scratch operand']
  %s0 = inlined_call_operand.hbm [shape: bf16[256,256], index: 0, kind: input, shape index: {}]
  %s1 = inlined_call_operand.hbm [shape: bf16[256,256], index: 1, kind: input, shape index: {}]
  %s2 = inlined_call_operand.hbm [shape: f32[1,256], index: 2, kind: input, shape index: {}]
  %s3 = inlined_call_operand.vmem [shape: f32[1,256], index: 3, kind: input, shape index: {}]
  %s4 = inlined_call_operand.hbm [shape: bf16[512,256], index: 4, kind: input, shape index: {}]
  %s5 = inlined_call_operand.hbm [shape: bf16[512,256], index: 5, kind: input, shape index: {}]
  %s6 = inlined_call_operand.hbm [shape: bf16[256,256], index: 6, kind: output, shape index: {}]
  %s7 = sld [smem:[#allocation0]]
  $region81: #{tpu_custom_call.1} parent=0
    _
  %s9 = ssub.s32 1, %s7
  %s10 = scalar_select 0, %s9, %s7
  $region1: #{tpu_custom_call.1} parent=0
    #allocation4 [shape = 'u8[131072]{0}', space=vmem, size = 0x20000, scoped, tag = 'input window, operand 0']
    #allocation5 [shape = 's32[2]{0}', space=sflag, size = 0x8, scoped, tag = 'scoped memory for tpu_custom_call.1']
    #allocation6 [shape = 's32[2]{0}', space=sflag, size = 0x8, scoped, tag = 'scoped memory for tpu_custom_call.1']
    #allocation7 [shape = 'u8[131072]{0}', space=vmem, size = 0x20000, scoped, tag = 'input window, operand 1']
    #allocation8 [shape = 's32[2]{0}', space=sflag, size = 0x8, scoped, tag = 'scoped memory for tpu_custom_call.1']
    #allocation9 [shape = 'u8[1024]{0}', space=vmem, size = 0x400, scoped, tag = 'input window, operand 2, single buffered']
    #allocation10 [shape = 'u8[131072]{0}', space=vmem, size = 0x20000, scoped, tag = 'input window, operand 4']
    #allocation11 [shape = 's32[2]{0}', space=sflag, size = 0x8, scoped, tag = 'scoped memory for tpu_custom_call.1']
    #allocation12 [shape = 'u8[131072]{0}', space=vmem, size = 0x20000, scoped, tag = 'input window, operand 5']
    #allocation13 [shape = 'u8[65536]{0}', space=vmem, size = 0x10000, scoped, tag = 'output window, operand 0']
    %11 = vsyncpa [#allocation5], 0
    %s12 = scalar_lea.sflag [#allocation5], 1
    %13 = vsyncpa %s12, 0
    %14 = vsyncpa [#allocation8], 0
    %s15 = scalar_lea.sflag [#allocation8], 1
    %16 = vsyncpa %s15, 0
    %17 = vsyncpa [#allocation11], 0
    %s18 = scalar_lea.sflag [#allocation11], 1
    %19 = vsyncpa %s18, 0
    %20 = vsyncpa [#allocation6], 0
    %s21 = scalar_lea.sflag [#allocation6], 1
    %22 = vsyncpa %s21, 0
    loop: start=0, step=1, limit=6
    $region2: #{tpu_custom_call.1} parent=1 // loop_pre_header
      _
    $region3: #{tpu_custom_call.1} parent=1 // loop_header
      %s24 = sphi 0, %s28
      %p25 = scmp.ge.s32.totalorder %s24, 6
      %s31 = sphi 0, %s43
      %s32 = sphi 0, %s39
      %s33 = sphi 0, %s31
      %s34 = sphi 0, %s32
      %s35 = sphi 0, %s33
      %s36 = sphi 0, %s34
      %s46 = sphi 0, %s48
      %s49 = sphi 0, %s46
      %s50 = sphi 0, %s49
      %s66 = sphi 0, %s50
      %s72 = sphi 0, %s74
      %s75 = sphi 0, %s72
      %s76 = sphi 0, %s75
      %s92 = sphi 0, %s76
      %s96 = sphi 0, %s96
      %s98 = sphi 0, %s96
      %s99 = sphi 0, %s98
      %s113 = sphi 0, %s99
      %s117 = sphi 0, %s117
      %s119 = sphi 0, %s117
      %s120 = sphi 0, %s119
      %s134 = sphi 0, %s120
      %s140 = sphi 0, %s142
      %s143 = sphi 0, %s140
      %s144 = sphi 0, %s143
      %s160 = sphi 0, %s144
      %s166 = sphi 0, %s168
      %s169 = sphi 0, %s166
      %s170 = sphi 0, %s169
      %s186 = sphi 0, %s170
      %s194 = sphi 0, %s196
      %s197 = sphi 0, %s194
      %s198 = sphi 0, %s197
      %s214 = sphi 0, %s198
    $region4: #{tpu_custom_call.1} parent=1 // loop_header_branch
      %27 = sbr.rel (%p25) target = $region8
    $region5: #{tpu_custom_call.1} parent=1 // loop_body
      %s29 = ssub.s32 %s24, 1
      %s30 = ssub.s32 %s24, 2
      %s37 = sadd.s32 1, %s32
      %p38 = scmp.ge.s32.totalorder %s37, 2
      %s39 = scalar_select %p38, 0, %s37
      %s40 = sadd.s32 1, %s31
      %s41 = scalar_select %p38, %s40, %s31
      %p42 = scmp.ge.s32.totalorder %s41, 2
      %s43 = scalar_select %p42, 0, %s41
      %s44 = ssub.s32 %s31, %s43
      %p45 = scmp.eq.s32.totalorder %s44, 0
      %s47 = sadd.s32 %s46, 1
      %s48 = scalar_select %p45, %s46, %s47
      %p51 = pneg %p45
      %p52 = scmp.eq.s32.totalorder %s24, 3
      %p53 = por %p51, %p52
      %p54 = scmp.ne.s32.totalorder %s46, %s49
      %p55 = scmp.eq.s32.totalorder %s24, 0
      %p56 = por %p54, %p55
      %p57 = scmp.ne.s32.totalorder %s46, %s49
      %p58 = scmp.eq.s32.totalorder %s29, 3
      %p59 = por %p57, %p58
      %p60 = scmp.ne.s32.totalorder %s49, %s50
      %p61 = scmp.eq.s32.totalorder %s29, 0
      %p62 = por %p60, %p61
      %p63 = scmp.ne.s32.totalorder %s49, %s50
      %p64 = scmp.eq.s32.totalorder %s30, 3
      %p65 = por %p63, %p64
      %p67 = scmp.ne.s32.totalorder %s50, %s66
      %p68 = scmp.eq.s32.totalorder %s30, 0
      %p69 = por %p67, %p68
      %s70 = ssub.s32 %s31, %s43
      %p71 = scmp.eq.s32.totalorder %s70, 0
      %s73 = sadd.s32 %s72, 1
      %s74 = scalar_select %p71, %s72, %s73
      %p77 = pneg %p71
      %p78 = scmp.eq.s32.totalorder %s24, 3
      %p79 = por %p77, %p78
      %p80 = scmp.ne.s32.totalorder %s72, %s75
      %p81 = scmp.eq.s32.totalorder %s24, 0
      %p82 = por %p80, %p81
      %p83 = scmp.ne.s32.totalorder %s72, %s75
      %p84 = scmp.eq.s32.totalorder %s29, 3
      %p85 = por %p83, %p84
      %p86 = scmp.ne.s32.totalorder %s75, %s76
      %p87 = scmp.eq.s32.totalorder %s29, 0
      %p88 = por %p86, %p87
      %p89 = scmp.ne.s32.totalorder %s75, %s76
      %p90 = scmp.eq.s32.totalorder %s30, 3
      %p91 = por %p89, %p90
      %p93 = scmp.ne.s32.totalorder %s76, %s92
      %p94 = scmp.eq.s32.totalorder %s30, 0
      %p95 = por %p93, %p94
      %s97 = sadd.s32 %s96, 1
      %p100 = scmp.eq.s32.totalorder %s24, 3
      %p101 = scmp.ne.s32.totalorder %s96, %s98
      %p102 = scmp.eq.s32.totalorder %s24, 0
      %p103 = por %p101, %p102
      %p104 = scmp.ne.s32.totalorder %s96, %s98
      %p105 = scmp.eq.s32.totalorder %s29, 3
      %p106 = por %p104, %p105
      %p107 = scmp.ne.s32.totalorder %s98, %s99
      %p108 = scmp.eq.s32.totalorder %s29, 0
      %p109 = por %p107, %p108
      %p110 = scmp.ne.s32.totalorder %s98, %s99
      %p111 = scmp.eq.s32.totalorder %s30, 3
      %p112 = por %p110, %p111
      %p114 = scmp.ne.s32.totalorder %s99, %s113
      %p115 = scmp.eq.s32.totalorder %s30, 0
      %p116 = por %p114, %p115
      %s118 = sadd.s32 %s117, 1
      %p121 = scmp.eq.s32.totalorder %s24, 3
      %p122 = scmp.ne.s32.totalorder %s117, %s119
      %p123 = scmp.eq.s32.totalorder %s24, 0
      %p124 = por %p122, %p123
      %p125 = scmp.ne.s32.totalorder %s117, %s119
      %p126 = scmp.eq.s32.totalorder %s29, 3
      %p127 = por %p125, %p126
      %p128 = scmp.ne.s32.totalorder %s119, %s120
      %p129 = scmp.eq.s32.totalorder %s29, 0
      %p130 = por %p128, %p129
      %p131 = scmp.ne.s32.totalorder %s119, %s120
      %p132 = scmp.eq.s32.totalorder %s30, 3
      %p133 = por %p131, %p132
      %p135 = scmp.ne.s32.totalorder %s120, %s134
      %p136 = scmp.eq.s32.totalorder %s30, 0
      %p137 = por %p135, %p136
      %s138 = ssub.s32 %s32, %s39
      %p139 = scmp.eq.s32.totalorder %s138, 0
      %s141 = sadd.s32 %s140, 1
      %s142 = scalar_select %p139, %s140, %s141
      %p145 = pneg %p139
      %p146 = scmp.eq.s32.totalorder %s24, 3
      %p147 = por %p145, %p146
      %p148 = scmp.ne.s32.totalorder %s140, %s143
      %p149 = scmp.eq.s32.totalorder %s24, 0
      %p150 = por %p148, %p149
      %p151 = scmp.ne.s32.totalorder %s140, %s143
      %p152 = scmp.eq.s32.totalorder %s29, 3
      %p153 = por %p151, %p152
      %p154 = scmp.ne.s32.totalorder %s143, %s144
      %p155 = scmp.eq.s32.totalorder %s29, 0
      %p156 = por %p154, %p155
      %p157 = scmp.ne.s32.totalorder %s143, %s144
      %p158 = scmp.eq.s32.totalorder %s30, 3
      %p159 = por %p157, %p158
      %p161 = scmp.ne.s32.totalorder %s144, %s160
      %p162 = scmp.eq.s32.totalorder %s30, 0
      %p163 = por %p161, %p162
      %s164 = ssub.s32 %s32, %s39
      %p165 = scmp.eq.s32.totalorder %s164, 0
      %s167 = sadd.s32 %s166, 1
      %s168 = scalar_select %p165, %s166, %s167
      %p171 = pneg %p165
      %p172 = scmp.eq.s32.totalorder %s24, 3
      %p173 = por %p171, %p172
      %p174 = scmp.ne.s32.totalorder %s166, %s169
      %p175 = scmp.eq.s32.totalorder %s24, 0
      %p176 = por %p174, %p175
      %p177 = scmp.ne.s32.totalorder %s166, %s169
      %p178 = scmp.eq.s32.totalorder %s29, 3
      %p179 = por %p177, %p178
      %p180 = scmp.ne.s32.totalorder %s169, %s170
      %p181 = scmp.eq.s32.totalorder %s29, 0
      %p182 = por %p180, %p181
      %p183 = scmp.ne.s32.totalorder %s169, %s170
      %p184 = scmp.eq.s32.totalorder %s30, 3
      %p185 = por %p183, %p184
      %p187 = scmp.ne.s32.totalorder %s170, %s186
      %p188 = scmp.eq.s32.totalorder %s30, 0
      %p189 = por %p187, %p188
      %s190 = ssub.s32 %s31, %s43
      %s191 = ssub.s32 %s32, %s39
      %s192 = sor.u32 %s190, %s191
      %p193 = scmp.eq.s32.totalorder %s192, 0
      %s195 = sadd.s32 %s194, 1
      %s196 = scalar_select %p193, %s194, %s195
      %p199 = pneg %p193
      %p200 = scmp.eq.s32.totalorder %s24, 3
      %p201 = por %p199, %p200
      %p202 = scmp.ne.s32.totalorder %s194, %s197
      %p203 = scmp.eq.s32.totalorder %s24, 0
      %p204 = por %p202, %p203
      %p205 = scmp.ne.s32.totalorder %s194, %s197
      %p206 = scmp.eq.s32.totalorder %s29, 3
      %p207 = por %p205, %p206
      %p208 = scmp.ne.s32.totalorder %s197, %s198
      %p209 = scmp.eq.s32.totalorder %s29, 0
      %p210 = por %p208, %p209
      %p211 = scmp.ne.s32.totalorder %s197, %s198
      %p212 = scmp.eq.s32.totalorder %s30, 3
      %p213 = por %p211, %p212
      %p215 = scmp.ne.s32.totalorder %s198, %s214
      %p216 = scmp.eq.s32.totalorder %s30, 0
      %p217 = por %p215, %p216
      %p218 = scmp.le.s32.totalorder 1, %s24
      %p219 = scmp.lt.s32.totalorder %s24, 5
      %p220 = pnand %p218, %p219
      %p221 = pneg %p220
      // Predicated region
      $region9: #{tpu_custom_call.1} parent=5 // pred_check
        _
      $region10: #{tpu_custom_call.1} parent=5 // pred_check_branch
        %223 = sbr.rel (%p220) target = $region12
      $region11: #{tpu_custom_call.1} parent=5 // pred_region
        %s224 = ssub.s32 %s24, 1
        // Predicated region
        $region13: #{tpu_custom_call.1} parent=11 // pred_check
          %p225 = pneg %p109
        $region14: #{tpu_custom_call.1} parent=11 // pred_check_branch
          %227 = sbr.rel (%p225) target = $region16
        $region15: #{tpu_custom_call.1} parent=11 // pred_region
          %229 = vsyncadd [#allocation8], 0
          %s231 = sshll.u32 %s2, 4
          %s232 = int_to_ptr.hbm [resolvable:$true] %s231
          %s233 = sshll.u32 [#allocation9], 4
          %s234 = int_to_ptr.vmem [resolvable:$true] %s233
          %236 = dma.hbm_to_vmem [thread:$0]  %s232, 32, %s234, [#allocation8]
        $region16: #{tpu_custom_call.1} parent=11 // pred_fallthru
          _
        // Predicated region
        $region17: #{tpu_custom_call.1} parent=11 // pred_check
          %p237 = pneg %p130
        $region18: #{tpu_custom_call.1} parent=11 // pred_check_branch
          %239 = sbr.rel (%p237) target = $region20
        $region19: #{tpu_custom_call.1} parent=11 // pred_region
          _
        $region20: #{tpu_custom_call.1} parent=11 // pred_fallthru
          _
      $region12: #{tpu_custom_call.1} parent=5 // pred_fallthru
        _
      %p240 = scmp.lt.s32.totalorder %s24, 4
      // Predicated region
      $region21: #{tpu_custom_call.1} parent=5 // pred_check
        %p241 = pneg %p240
      $region22: #{tpu_custom_call.1} parent=5 // pred_check_branch
        %243 = sbr.rel (%p241) target = $region24
      $region23: #{tpu_custom_call.1} parent=5 // pred_region
        // Predicated region
        $region25: #{tpu_custom_call.1} parent=23 // pred_check
          %p244 = pneg %p56
        $region26: #{tpu_custom_call.1} parent=23 // pred_check_branch
          %246 = sbr.rel (%p244) target = $region28
        $region27: #{tpu_custom_call.1} parent=23 // pred_region
          %s247 = sand.u32 %s46, 1
          %s248 = scalar_lea.sflag [#allocation5], %s247
          %s249 = sand.u32 %s46, 1
          %s250 = smul.addr %s249, 128
          %s251 = scalar_lea.vmem [#allocation4], %s250
          %s252 = smul.u32 16, %s31
          %254 = vsyncadd %s248, 0
          %s255 = smul.addr %s252, 2
          %s256 = smul.addr %s255, 4
          %s257 = scalar_lea.hbm %s0, %s256
          %s258 = sshll.u32 %s257, 4
          %s259 = int_to_ptr.hbm [resolvable:$true] %s258
          %s260 = sshll.u32 %s251, 4
          %s261 = int_to_ptr.vmem [resolvable:$true] %s260
          %266 = dma.hbm_to_vmem [thread:$0]  %s259, 2048, %s261, %s248, 128, 128, 8
        $region28: #{tpu_custom_call.1} parent=23 // pred_fallthru
          _
        // Predicated region
        $region29: #{tpu_custom_call.1} parent=23 // pred_check
          %p267 = pneg %p82
        $region30: #{tpu_custom_call.1} parent=23 // pred_check_branch
          %269 = sbr.rel (%p267) target = $region32
        $region31: #{tpu_custom_call.1} parent=23 // pred_region
          %s270 = sand.u32 %s24, 1
          %s271 = scalar_lea.sflag [#allocation8], %s270
          %s272 = sand.u32 %s72, 1
          %s273 = smul.addr %s272, 128
          %s274 = scalar_lea.vmem [#allocation7], %s273
          %s275 = smul.u32 16, %s31
          %277 = vsyncadd %s271, 0
          %s278 = smul.addr %s275, 2
          %s279 = smul.addr %s278, 4
          %s280 = scalar_lea.hbm %s1, %s279
          %s281 = sshll.u32 %s280, 4
          %s282 = int_to_ptr.hbm [resolvable:$true] %s281
          %s283 = sshll.u32 %s274, 4
          %s284 = int_to_ptr.vmem [resolvable:$true] %s283
          %289 = dma.hbm_to_vmem [thread:$0]  %s282, 2048, %s284, %s271, 128, 128, 8
        $region32: #{tpu_custom_call.1} parent=23 // pred_fallthru
          _
        // Predicated region
        $region33: #{tpu_custom_call.1} parent=23 // pred_check
          %p290 = pneg %p150
        $region34: #{tpu_custom_call.1} parent=23 // pred_check_branch
          %292 = sbr.rel (%p290) target = $region36
        $region35: #{tpu_custom_call.1} parent=23 // pred_region
          %s293 = sand.u32 %s24, 1
          %s294 = scalar_lea.sflag [#allocation11], %s293
          %s295 = sand.u32 %s140, 1
          %s296 = smul.addr %s295, 128
          %s297 = scalar_lea.vmem [#allocation10], %s296
          %299 = vsyncadd %s294, 0
          %s300 = smul.addr %s32, 4
          %s301 = scalar_lea.hbm %s4, %s300
          %s302 = sshll.u32 %s301, 4
          %s303 = int_to_ptr.hbm [resolvable:$true] %s302
          %s304 = sshll.u32 %s297, 4
          %s305 = int_to_ptr.vmem [resolvable:$true] %s304
          %310 = dma.hbm_to_vmem [thread:$0]  %s303, 2048, %s305, %s294, 128, 64, 4
        $region36: #{tpu_custom_call.1} parent=23 // pred_fallthru
          _
        // Predicated region
        $region37: #{tpu_custom_call.1} parent=23 // pred_check
          %p311 = pneg %p176
        $region38: #{tpu_custom_call.1} parent=23 // pred_check_branch
          %313 = sbr.rel (%p311) target = $region40
        $region39: #{tpu_custom_call.1} parent=23 // pred_region
          %s314 = sand.u32 %s24, 1
          %s315 = scalar_lea.sflag [#allocation11], %s314
          %s316 = sand.u32 %s166, 1
          %s317 = smul.addr %s316, 128
          %s318 = scalar_lea.vmem [#allocation12], %s317
          %320 = vsyncadd %s315, 0
          %s321 = sadd.s32 %s32, 64
          %s322 = smul.addr %s321, 4
          %s323 = scalar_lea.hbm %s5, %s322
          %s324 = sshll.u32 %s323, 4
          %s325 = int_to_ptr.hbm [resolvable:$true] %s324
          %s326 = sshll.u32 %s318, 4
          %s327 = int_to_ptr.vmem [resolvable:$true] %s326
          %332 = dma.hbm_to_vmem [thread:$0]  %s325, 2048, %s327, %s315, 128, 64, 4
        $region40: #{tpu_custom_call.1} parent=23 // pred_fallthru
          _
      $region24: #{tpu_custom_call.1} parent=5 // pred_fallthru
        _
      %p333 = scmp.le.s32.totalorder 1, %s24
      %p334 = scmp.lt.s32.totalorder %s24, 5
      %p335 = pnand %p333, %p334
      %p336 = pneg %p335
      // Predicated region
      $region41: #{tpu_custom_call.1} parent=5 // pred_check
        _
      $region42: #{tpu_custom_call.1} parent=5 // pred_check_branch
        %338 = sbr.rel (%p335) target = $region44
      $region43: #{tpu_custom_call.1} parent=5 // pred_region
        %s339 = ssub.s32 %s24, 1
        %s340 = sand.u32 %s49, 1
        %s341 = scalar_lea.sflag [#allocation5], %s340
        %s342 = sand.u32 %s49, 1
        %s343 = smul.addr %s342, 128
        %s344 = scalar_lea.vmem [#allocation4], %s343
        // Predicated region
        $region45: #{tpu_custom_call.1} parent=43 // pred_check
          %p345 = pneg %p62
        $region46: #{tpu_custom_call.1} parent=43 // pred_check_branch
          %347 = sbr.rel (%p345) target = $region48
        $region47: #{tpu_custom_call.1} parent=43 // pred_region
          %349 = dma.done %s341, 2048
        $region48: #{tpu_custom_call.1} parent=43 // pred_fallthru
          _
        %s350 = sand.u32 %s29, 1
        %s351 = scalar_lea.sflag [#allocation8], %s350
        %s352 = sand.u32 %s75, 1
        %s353 = smul.addr %s352, 128
        %s354 = scalar_lea.vmem [#allocation7], %s353
        // Predicated region
        $region49: #{tpu_custom_call.1} parent=43 // pred_check
          %p355 = pneg %p88
        $region50: #{tpu_custom_call.1} parent=43 // pred_check_branch
          %357 = sbr.rel (%p355) target = $region52
        $region51: #{tpu_custom_call.1} parent=43 // pred_region
          %359 = dma.done %s351, 2048
        $region52: #{tpu_custom_call.1} parent=43 // pred_fallthru
          _
        // Predicated region
        $region53: #{tpu_custom_call.1} parent=43 // pred_check
          %p360 = pneg %p109
        $region54: #{tpu_custom_call.1} parent=43 // pred_check_branch
          %362 = sbr.rel (%p360) target = $region56
        $region55: #{tpu_custom_call.1} parent=43 // pred_region
          %364 = dma.done [#allocation8], 32
        $region56: #{tpu_custom_call.1} parent=43 // pred_fallthru
          _
        %s365 = sand.u32 %s29, 1
        %s366 = scalar_lea.sflag [#allocation11], %s365
        %s367 = sand.u32 %s143, 1
        %s368 = smul.addr %s367, 128
        %s369 = scalar_lea.vmem [#allocation10], %s368
        // Predicated region
        $region57: #{tpu_custom_call.1} parent=43 // pred_check
          %p370 = pneg %p156
        $region58: #{tpu_custom_call.1} parent=43 // pred_check_branch
          %372 = sbr.rel (%p370) target = $region60
        $region59: #{tpu_custom_call.1} parent=43 // pred_region
          %374 = dma.done %s366, 2048
        $region60: #{tpu_custom_call.1} parent=43 // pred_fallthru
          _
        %s375 = sand.u32 %s29, 1
        %s376 = scalar_lea.sflag [#allocation11], %s375
        %s377 = sand.u32 %s169, 1
        %s378 = smul.addr %s377, 128
        %s379 = scalar_lea.vmem [#allocation12], %s378
        // Predicated region
        $region61: #{tpu_custom_call.1} parent=43 // pred_check
          %p380 = pneg %p182
        $region62: #{tpu_custom_call.1} parent=43 // pred_check_branch
          %382 = sbr.rel (%p380) target = $region64
        $region63: #{tpu_custom_call.1} parent=43 // pred_region
          %384 = dma.done %s376, 2048
        $region64: #{tpu_custom_call.1} parent=43 // pred_fallthru
          _
        %s385 = sand.u32 %s49, 1
        %s386 = scalar_lea.sflag [#allocation5], %s385
        %s387 = sand.u32 %s49, 1
        %s388 = smul.addr %s387, 128
        %s389 = scalar_lea.vmem [#allocation4], %s388
        %p390 = pneg %p62
        %p391 = pneg %p59
        %s392 = sand.u32 %s29, 1
        %s393 = scalar_lea.sflag [#allocation8], %s392
        %s394 = sand.u32 %s75, 1
        %s395 = smul.addr %s394, 128
        %s396 = scalar_lea.vmem [#allocation7], %s395
        %p397 = pneg %p88
        %p398 = pneg %p85
        %p399 = pneg %p109
        %p400 = pneg %p106
        %p401 = pneg %p130
        %p402 = pneg %p127
        %s403 = sand.u32 %s29, 1
        %s404 = scalar_lea.sflag [#allocation11], %s403
        %s405 = sand.u32 %s143, 1
        %s406 = smul.addr %s405, 128
        %s407 = scalar_lea.vmem [#allocation10], %s406
        %p408 = pneg %p156
        %p409 = pneg %p153
        %s410 = sand.u32 %s29, 1
        %s411 = scalar_lea.sflag [#allocation11], %s410
        %s412 = sand.u32 %s169, 1
        %s413 = smul.addr %s412, 128
        %s414 = scalar_lea.vmem [#allocation12], %s413
        %p415 = pneg %p182
        %p416 = pneg %p179
        %p417 = pneg %p210
        %p418 = pneg %p207
        %s419 = sand.u32 %s197, 1
        %s420 = scalar_lea.sflag [#allocation6], %s419
        %s421 = sand.u32 %s197, 1
        %s422 = smul.addr %s421, 64
        %s423 = scalar_lea.vmem [#allocation13], %s422
        %s424 = smul.u32 16, %s33
        %s425 = smul.u32 16, %s33
        %s426 = smul.u32 16, %s33
        %p427 = scmp.eq.s32.totalorder %s34, 0
        // Predicated region
        $region65: #{tpu_custom_call.1} parent=43 // pred_check
          %p428 = pneg %p427
        $region66: #{tpu_custom_call.1} parent=43 // pred_check_branch
          %430 = sbr.rel (%p428) target = $region68
        $region67: #{tpu_custom_call.1} parent=43 // pred_region
          %v431 = vld [vmem:[%s344] sm:$0xff]
          %v432 = vld [vmem:[%s344 + $0x8] sm:$0xff]
          %v433 = vld [vmem:[%s344 + $0x10] sm:$0xff]
          %v434 = vld [vmem:[%s344 + $0x18] sm:$0xff]
          %v435 = vld [vmem:[%s344 + $0x20] sm:$0xff]
          %v436 = vld [vmem:[%s344 + $0x28] sm:$0xff]
          %v437 = vld [vmem:[%s344 + $0x30] sm:$0xff]
          %v438 = vld [vmem:[%s344 + $0x38] sm:$0xff]
          %v439 = vld [vmem:[%s344 + $0x40] sm:$0xff]
          %v440 = vld [vmem:[%s344 + $0x48] sm:$0xff]
          %v441 = vld [vmem:[%s344 + $0x50] sm:$0xff]
          %v442 = vld [vmem:[%s344 + $0x58] sm:$0xff]
          %v443 = vld [vmem:[%s344 + $0x60] sm:$0xff]
          %v444 = vld [vmem:[%s344 + $0x68] sm:$0xff]
          %v445 = vld [vmem:[%s344 + $0x70] sm:$0xff]
          %v446 = vld [vmem:[%s344 + $0x78] sm:$0xff]
          %v447 = vunpack.c.l.bf16 %v431
          %v448 = vunpack.c.h.bf16 %v431
          %v449 = vunpack.c.l.bf16 %v432
          %v450 = vunpack.c.h.bf16 %v432
          %v451 = vunpack.c.l.bf16 %v433
          %v452 = vunpack.c.h.bf16 %v433
          %v453 = vunpack.c.l.bf16 %v434
          %v454 = vunpack.c.h.bf16 %v434
          %v455 = vunpack.c.l.bf16 %v435
          %v456 = vunpack.c.h.bf16 %v435
          %v457 = vunpack.c.l.bf16 %v436
          %v458 = vunpack.c.h.bf16 %v436
          %v459 = vunpack.c.l.bf16 %v437
          %v460 = vunpack.c.h.bf16 %v437
          %v461 = vunpack.c.l.bf16 %v438
          %v462 = vunpack.c.h.bf16 %v438
          %v463 = vunpack.c.l.bf16 %v439
          %v464 = vunpack.c.h.bf16 %v439
          %v465 = vunpack.c.l.bf16 %v440
          %v466 = vunpack.c.h.bf16 %v440
          %v467 = vunpack.c.l.bf16 %v441
          %v468 = vunpack.c.h.bf16 %v441
          %v469 = vunpack.c.l.bf16 %v442
          %v470 = vunpack.c.h.bf16 %v442
          %v471 = vunpack.c.l.bf16 %v443
          %v472 = vunpack.c.h.bf16 %v443
          %v473 = vunpack.c.l.bf16 %v444
          %v474 = vunpack.c.h.bf16 %v444
          %v475 = vunpack.c.l.bf16 %v445
          %v476 = vunpack.c.h.bf16 %v445
          %v477 = vunpack.c.l.bf16 %v446
          %v478 = vunpack.c.h.bf16 %v446
          %v479 = vld [vmem:[#allocation9] sm:$0x3]
          %v480 = vmul.f32 %v447, %v447
          %v481 = vmul.f32 %v448, %v448
          %v482 = vmul.f32 %v449, %v449
          %v483 = vmul.f32 %v450, %v450
          %v484 = vmul.f32 %v451, %v451
          %v485 = vmul.f32 %v452, %v452
          %v486 = vmul.f32 %v453, %v453
          %v487 = vmul.f32 %v454, %v454
          %v488 = vmul.f32 %v455, %v455
          %v489 = vmul.f32 %v456, %v456
          %v490 = vmul.f32 %v457, %v457
          %v491 = vmul.f32 %v458, %v458
          %v492 = vmul.f32 %v459, %v459
          %v493 = vmul.f32 %v460, %v460
          %v494 = vmul.f32 %v461, %v461
          %v495 = vmul.f32 %v462, %v462
          %v496 = vmul.f32 %v463, %v463
          %v497 = vmul.f32 %v464, %v464
          %v498 = vmul.f32 %v465, %v465
          %v499 = vmul.f32 %v466, %v466
          %v500 = vmul.f32 %v467, %v467
          %v501 = vmul.f32 %v468, %v468
          %v502 = vmul.f32 %v469, %v469
          %v503 = vmul.f32 %v470, %v470
          %v504 = vmul.f32 %v471, %v471
          %v505 = vmul.f32 %v472, %v472
          %v506 = vmul.f32 %v473, %v473
          %v507 = vmul.f32 %v474, %v474
          %v508 = vmul.f32 %v475, %v475
          %v509 = vmul.f32 %v476, %v476
          %v510 = vmul.f32 %v477, %v477
          %v511 = vmul.f32 %v478, %v478
          %v512 = vadd.f32 %v480, %v481
          %513 = vadd.xlane.f32.xlu0 %v512
          %v514 = vpop.xlane.xlu0 %513
          %v515 = vadd.f32 %v482, %v483
          %516 = vadd.xlane.f32.xlu0 %v515
          %v517 = vpop.xlane.xlu0 %516
          %v518 = vadd.f32 %v484, %v485
          %519 = vadd.xlane.f32.xlu0 %v518
          %v520 = vpop.xlane.xlu0 %519
          %v521 = vadd.f32 %v486, %v487
          %522 = vadd.xlane.f32.xlu0 %v521
          %v523 = vpop.xlane.xlu0 %522
          %v524 = vadd.f32 %v488, %v489
          %525 = vadd.xlane.f32.xlu0 %v524
          %v526 = vpop.xlane.xlu0 %525
          %v527 = vadd.f32 %v490, %v491
          %528 = vadd.xlane.f32.xlu0 %v527
          %v529 = vpop.xlane.xlu0 %528
          %v530 = vadd.f32 %v492, %v493
          %531 = vadd.xlane.f32.xlu0 %v530
          %v532 = vpop.xlane.xlu0 %531
          %v533 = vadd.f32 %v494, %v495
          %534 = vadd.xlane.f32.xlu0 %v533
          %v535 = vpop.xlane.xlu0 %534
          %v536 = vadd.f32 %v496, %v497
          %537 = vadd.xlane.f32.xlu0 %v536
          %v538 = vpop.xlane.xlu0 %537
          %v539 = vadd.f32 %v498, %v499
          %540 = vadd.xlane.f32.xlu0 %v539
          %v541 = vpop.xlane.xlu0 %540
          %v542 = vadd.f32 %v500, %v501
          %543 = vadd.xlane.f32.xlu0 %v542
          %v544 = vpop.xlane.xlu0 %543
          %v545 = vadd.f32 %v502, %v503
          %546 = vadd.xlane.f32.xlu0 %v545
          %v547 = vpop.xlane.xlu0 %546
          %v548 = vadd.f32 %v504, %v505
          %549 = vadd.xlane.f32.xlu0 %v548
          %v550 = vpop.xlane.xlu0 %549
          %v551 = vadd.f32 %v506, %v507
          %552 = vadd.xlane.f32.xlu0 %v551
          %v553 = vpop.xlane.xlu0 %552
          %v554 = vadd.f32 %v508, %v509
          %555 = vadd.xlane.f32.xlu0 %v554
          %v556 = vpop.xlane.xlu0 %555
          %v557 = vadd.f32 %v510, %v511
          %558 = vadd.xlane.f32.xlu0 %v557
          %v559 = vpop.xlane.xlu0 %558
          %v560 = vrcp.pop 256.0
          %v561 = vmul.f32 256.0, %v560
          %v562 = vsub.f32 1.0, %v561
          %v563 = vmul.f32 %v560, %v562
          %v564 = vadd.f32 %v560, %v563
          %vm565 = vweird.f32 %v560
          %v566 = vsel %vm565, %v560, %v564
          %v567 = vmul.f32 %v514, %v566
          %v568 = vmul.f32 %v517, %v566
          %v569 = vmul.f32 %v520, %v566
          %v570 = vmul.f32 %v523, %v566
          %v571 = vmul.f32 %v526, %v566
          %v572 = vmul.f32 %v529, %v566
          %v573 = vmul.f32 %v532, %v566
          %v574 = vmul.f32 %v535, %v566
          %v575 = vmul.f32 %v538, %v566
          %v576 = vmul.f32 %v541, %v566
          %v577 = vmul.f32 %v544, %v566
          %v578 = vmul.f32 %v547, %v566
          %v579 = vmul.f32 %v550, %v566
          %v580 = vmul.f32 %v553, %v566
          %v581 = vmul.f32 %v556, %v566
          %v582 = vmul.f32 %v559, %v566
          %v583 = vadd.f32 %v567, 1e-06
          %v584 = vadd.f32 %v568, 1e-06
          %v585 = vadd.f32 %v569, 1e-06
          %v586 = vadd.f32 %v570, 1e-06
          %v587 = vadd.f32 %v571, 1e-06
          %v588 = vadd.f32 %v572, 1e-06
          %v589 = vadd.f32 %v573, 1e-06
          %v590 = vadd.f32 %v574, 1e-06
          %v591 = vadd.f32 %v575, 1e-06
          %v592 = vadd.f32 %v576, 1e-06
          %v593 = vadd.f32 %v577, 1e-06
          %v594 = vadd.f32 %v578, 1e-06
          %v595 = vadd.f32 %v579, 1e-06
          %v596 = vadd.f32 %v580, 1e-06
          %v597 = vadd.f32 %v581, 1e-06
          %v598 = vadd.f32 %v582, 1e-06
          %v599 = vrsqrt.pop %v583
          %v600 = vmul.f32 %v599, %v583
          %v601 = vmul.f32 %v600, %v599
          %v602 = vmul.f32 0.5, %v601
          %v603 = vsub.f32 1.5, %v602
          %v604 = vmul.f32 %v599, %v603
          %vm605 = vweird.f32 %v583
          %vm606 = vweird.f32 %v599
          %vm607 = vmor %vm605, %vm606
          %v608 = vsel %vm607, %v599, %v604
          %v609 = vrsqrt.pop %v584
          %v610 = vmul.f32 %v609, %v584
          %v611 = vmul.f32 %v610, %v609
          %v612 = vmul.f32 0.5, %v611
          %v613 = vsub.f32 1.5, %v612
          %v614 = vmul.f32 %v609, %v613
          %vm615 = vweird.f32 %v584
          %vm616 = vweird.f32 %v609
          %vm617 = vmor %vm615, %vm616
          %v618 = vsel %vm617, %v609, %v614
          %v619 = vrsqrt.pop %v585
          %v620 = vmul.f32 %v619, %v585
          %v621 = vmul.f32 %v620, %v619
          %v622 = vmul.f32 0.5, %v621
          %v623 = vsub.f32 1.5, %v622
          %v624 = vmul.f32 %v619, %v623
          %vm625 = vweird.f32 %v585
          %vm626 = vweird.f32 %v619
          %vm627 = vmor %vm625, %vm626
          %v628 = vsel %vm627, %v619, %v624
          %v629 = vrsqrt.pop %v586
          %v630 = vmul.f32 %v629, %v586
          %v631 = vmul.f32 %v630, %v629
          %v632 = vmul.f32 0.5, %v631
          %v633 = vsub.f32 1.5, %v632
          %v634 = vmul.f32 %v629, %v633
          %vm635 = vweird.f32 %v586
          %vm636 = vweird.f32 %v629
          %vm637 = vmor %vm635, %vm636
          %v638 = vsel %vm637, %v629, %v634
          %v639 = vrsqrt.pop %v587
          %v640 = vmul.f32 %v639, %v587
          %v641 = vmul.f32 %v640, %v639
          %v642 = vmul.f32 0.5, %v641
          %v643 = vsub.f32 1.5, %v642
          %v644 = vmul.f32 %v639, %v643
          %vm645 = vweird.f32 %v587
          %vm646 = vweird.f32 %v639
          %vm647 = vmor %vm645, %vm646
          %v648 = vsel %vm647, %v639, %v644
          %v649 = vrsqrt.pop %v588
          %v650 = vmul.f32 %v649, %v588
          %v651 = vmul.f32 %v650, %v649
          %v652 = vmul.f32 0.5, %v651
          %v653 = vsub.f32 1.5, %v652
          %v654 = vmul.f32 %v649, %v653
          %vm655 = vweird.f32 %v588
          %vm656 = vweird.f32 %v649
          %vm657 = vmor %vm655, %vm656
          %v658 = vsel %vm657, %v649, %v654
          %v659 = vrsqrt.pop %v589
          %v660 = vmul.f32 %v659, %v589
          %v661 = vmul.f32 %v660, %v659
          %v662 = vmul.f32 0.5, %v661
          %v663 = vsub.f32 1.5, %v662
          %v664 = vmul.f32 %v659, %v663
          %vm665 = vweird.f32 %v589
          %vm666 = vweird.f32 %v659
          %vm667 = vmor %vm665, %vm666
          %v668 = vsel %vm667, %v659, %v664
          %v669 = vrsqrt.pop %v590
          %v670 = vmul.f32 %v669, %v590
          %v671 = vmul.f32 %v670, %v669
          %v672 = vmul.f32 0.5, %v671
          %v673 = vsub.f32 1.5, %v672
          %v674 = vmul.f32 %v669, %v673
          %vm675 = vweird.f32 %v590
          %vm676 = vweird.f32 %v669
          %vm677 = vmor %vm675, %vm676
          %v678 = vsel %vm677, %v669, %v674
          %v679 = vrsqrt.pop %v591
          %v680 = vmul.f32 %v679, %v591
          %v681 = vmul.f32 %v680, %v679
          %v682 = vmul.f32 0.5, %v681
          %v683 = vsub.f32 1.5, %v682
          %v684 = vmul.f32 %v679, %v683
          %vm685 = vweird.f32 %v591
          %vm686 = vweird.f32 %v679
          %vm687 = vmor %vm685, %vm686
          %v688 = vsel %vm687, %v679, %v684
          %v689 = vrsqrt.pop %v592
          %v690 = vmul.f32 %v689, %v592
          %v691 = vmul.f32 %v690, %v689
          %v692 = vmul.f32 0.5, %v691
          %v693 = vsub.f32 1.5, %v692
          %v694 = vmul.f32 %v689, %v693
          %vm695 = vweird.f32 %v592
          %vm696 = vweird.f32 %v689
          %vm697 = vmor %vm695, %vm696
          %v698 = vsel %vm697, %v689, %v694
          %v699 = vrsqrt.pop %v593
          %v700 = vmul.f32 %v699, %v593
          %v701 = vmul.f32 %v700, %v699
          %v702 = vmul.f32 0.5, %v701
          %v703 = vsub.f32 1.5, %v702
          %v704 = vmul.f32 %v699, %v703
          %vm705 = vweird.f32 %v593
          %vm706 = vweird.f32 %v699
          %vm707 = vmor %vm705, %vm706
          %v708 = vsel %vm707, %v699, %v704
          %v709 = vrsqrt.pop %v594
          %v710 = vmul.f32 %v709, %v594
          %v711 = vmul.f32 %v710, %v709
          %v712 = vmul.f32 0.5, %v711
          %v713 = vsub.f32 1.5, %v712
          %v714 = vmul.f32 %v709, %v713
          %vm715 = vweird.f32 %v594
          %vm716 = vweird.f32 %v709
          %vm717 = vmor %vm715, %vm716
          %v718 = vsel %vm717, %v709, %v714
          %v719 = vrsqrt.pop %v595
          %v720 = vmul.f32 %v719, %v595
          %v721 = vmul.f32 %v720, %v719
          %v722 = vmul.f32 0.5, %v721
          %v723 = vsub.f32 1.5, %v722
          %v724 = vmul.f32 %v719, %v723
          %vm725 = vweird.f32 %v595
          %vm726 = vweird.f32 %v719
          %vm727 = vmor %vm725, %vm726
          %v728 = vsel %vm727, %v719, %v724
          %v729 = vrsqrt.pop %v596
          %v730 = vmul.f32 %v729, %v596
          %v731 = vmul.f32 %v730, %v729
          %v732 = vmul.f32 0.5, %v731
          %v733 = vsub.f32 1.5, %v732
          %v734 = vmul.f32 %v729, %v733
          %vm735 = vweird.f32 %v596
          %vm736 = vweird.f32 %v729
          %vm737 = vmor %vm735, %vm736
          %v738 = vsel %vm737, %v729, %v734
          %v739 = vrsqrt.pop %v597
          %v740 = vmul.f32 %v739, %v597
          %v741 = vmul.f32 %v740, %v739
          %v742 = vmul.f32 0.5, %v741
          %v743 = vsub.f32 1.5, %v742
          %v744 = vmul.f32 %v739, %v743
          %vm745 = vweird.f32 %v597
          %vm746 = vweird.f32 %v739
          %vm747 = vmor %vm745, %vm746
          %v748 = vsel %vm747, %v739, %v744
          %v749 = vrsqrt.pop %v598
          %v750 = vmul.f32 %v749, %v598
          %v751 = vmul.f32 %v750, %v749
          %v752 = vmul.f32 0.5, %v751
          %v753 = vsub.f32 1.5, %v752
          %v754 = vmul.f32 %v749, %v753
          %vm755 = vweird.f32 %v598
          %vm756 = vweird.f32 %v749
          %vm757 = vmor %vm755, %vm756
          %v758 = vsel %vm757, %v749, %v754
          %v759 = vmul.f32 %v447, %v608
          %v760 = vmul.f32 %v448, %v608
          %v761 = vmul.f32 %v449, %v618
          %v762 = vmul.f32 %v450, %v618
          %v763 = vmul.f32 %v451, %v628
          %v764 = vmul.f32 %v452, %v628
          %v765 = vmul.f32 %v453, %v638
          %v766 = vmul.f32 %v454, %v638
          %v767 = vmul.f32 %v455, %v648
          %v768 = vmul.f32 %v456, %v648
          %v769 = vmul.f32 %v457, %v658
          %v770 = vmul.f32 %v458, %v658
          %v771 = vmul.f32 %v459, %v668
          %v772 = vmul.f32 %v460, %v668
          %v773 = vmul.f32 %v461, %v678
          %v774 = vmul.f32 %v462, %v678
          %v775 = vmul.f32 %v463, %v688
          %v776 = vmul.f32 %v464, %v688
          %v777 = vmul.f32 %v465, %v698
          %v778 = vmul.f32 %v466, %v698
          %v779 = vmul.f32 %v467, %v708
          %v780 = vmul.f32 %v468, %v708
          %v781 = vmul.f32 %v469, %v718
          %v782 = vmul.f32 %v470, %v718
          %v783 = vmul.f32 %v471, %v728
          %v784 = vmul.f32 %v472, %v728
          %v785 = vmul.f32 %v473, %v738
          %v786 = vmul.f32 %v474, %v738
          %v787 = vmul.f32 %v475, %v748
          %v788 = vmul.f32 %v476, %v748
          %v789 = vmul.f32 %v477, %v758
          %v790 = vmul.f32 %v478, %v758
          %v792 = vperm.slane %v479, 0
          %v793 = vperm.slane %v479, 1
          %v796 = vmul.f32 %v759, %v792
          %v797 = vmul.f32 %v760, %v793
          %v798 = vmul.f32 %v761, %v792
          %v799 = vmul.f32 %v762, %v793
          %v800 = vmul.f32 %v763, %v792
          %v801 = vmul.f32 %v764, %v793
          %v802 = vmul.f32 %v765, %v792
          %v803 = vmul.f32 %v766, %v793
          %v804 = vmul.f32 %v767, %v792
          %v805 = vmul.f32 %v768, %v793
          %v806 = vmul.f32 %v769, %v792
          %v807 = vmul.f32 %v770, %v793
          %v808 = vmul.f32 %v771, %v792
          %v809 = vmul.f32 %v772, %v793
          %v810 = vmul.f32 %v773, %v792
          %v811 = vmul.f32 %v774, %v793
          %v812 = vmul.f32 %v775, %v792
          %v813 = vmul.f32 %v776, %v793
          %v814 = vmul.f32 %v777, %v792
          %v815 = vmul.f32 %v778, %v793
          %v816 = vmul.f32 %v779, %v792
          %v817 = vmul.f32 %v780, %v793
          %v818 = vmul.f32 %v781, %v792
          %v819 = vmul.f32 %v782, %v793
          %v820 = vmul.f32 %v783, %v792
          %v821 = vmul.f32 %v784, %v793
          %v822 = vmul.f32 %v785, %v792
          %v823 = vmul.f32 %v786, %v793
          %v824 = vmul.f32 %v787, %v792
          %v825 = vmul.f32 %v788, %v793
          %v826 = vmul.f32 %v789, %v792
          %v827 = vmul.f32 %v790, %v793
          %v828 = vpack.c.bf16 %v797, %v796
          %v829 = vpack.c.bf16 %v799, %v798
          %v830 = vpack.c.bf16 %v801, %v800
          %v831 = vpack.c.bf16 %v803, %v802
          %v832 = vpack.c.bf16 %v805, %v804
          %v833 = vpack.c.bf16 %v807, %v806
          %v834 = vpack.c.bf16 %v809, %v808
          %v835 = vpack.c.bf16 %v811, %v810
          %v836 = vpack.c.bf16 %v813, %v812
          %v837 = vpack.c.bf16 %v815, %v814
          %v838 = vpack.c.bf16 %v817, %v816
          %v839 = vpack.c.bf16 %v819, %v818
          %v840 = vpack.c.bf16 %v821, %v820
          %v841 = vpack.c.bf16 %v823, %v822
          %v842 = vpack.c.bf16 %v825, %v824
          %v843 = vpack.c.bf16 %v827, %v826
          %844 = vst [vmem:[#allocation2] sm:$0xff] %v828
          %845 = vst [vmem:[#allocation2 + $0x8] sm:$0xff] %v829
          %846 = vst [vmem:[#allocation2 + $0x10] sm:$0xff] %v830
          %847 = vst [vmem:[#allocation2 + $0x18] sm:$0xff] %v831
          %848 = vst [vmem:[#allocation2 + $0x20] sm:$0xff] %v832
          %849 = vst [vmem:[#allocation2 + $0x28] sm:$0xff] %v833
          %850 = vst [vmem:[#allocation2 + $0x30] sm:$0xff] %v834
          %851 = vst [vmem:[#allocation2 + $0x38] sm:$0xff] %v835
          %852 = vst [vmem:[#allocation2 + $0x40] sm:$0xff] %v836
          %853 = vst [vmem:[#allocation2 + $0x48] sm:$0xff] %v837
          %854 = vst [vmem:[#allocation2 + $0x50] sm:$0xff] %v838
          %855 = vst [vmem:[#allocation2 + $0x58] sm:$0xff] %v839
          %856 = vst [vmem:[#allocation2 + $0x60] sm:$0xff] %v840
          %857 = vst [vmem:[#allocation2 + $0x68] sm:$0xff] %v841
          %858 = vst [vmem:[#allocation2 + $0x70] sm:$0xff] %v842
          %859 = vst [vmem:[#allocation2 + $0x78] sm:$0xff] %v843
          %v860 = vld [vmem:[%s354] sm:$0xff]
          %v861 = vld [vmem:[%s354 + $0x8] sm:$0xff]
          %v862 = vld [vmem:[%s354 + $0x10] sm:$0xff]
          %v863 = vld [vmem:[%s354 + $0x18] sm:$0xff]
          %v864 = vld [vmem:[%s354 + $0x20] sm:$0xff]
          %v865 = vld [vmem:[%s354 + $0x28] sm:$0xff]
          %v866 = vld [vmem:[%s354 + $0x30] sm:$0xff]
          %v867 = vld [vmem:[%s354 + $0x38] sm:$0xff]
          %v868 = vld [vmem:[%s354 + $0x40] sm:$0xff]
          %v869 = vld [vmem:[%s354 + $0x48] sm:$0xff]
          %v870 = vld [vmem:[%s354 + $0x50] sm:$0xff]
          %v871 = vld [vmem:[%s354 + $0x58] sm:$0xff]
          %v872 = vld [vmem:[%s354 + $0x60] sm:$0xff]
          %v873 = vld [vmem:[%s354 + $0x68] sm:$0xff]
          %v874 = vld [vmem:[%s354 + $0x70] sm:$0xff]
          %v875 = vld [vmem:[%s354 + $0x78] sm:$0xff]
          %v876 = vunpack.c.l.bf16 %v860
          %v877 = vunpack.c.h.bf16 %v860
          %v878 = vunpack.c.l.bf16 %v861
          %v879 = vunpack.c.h.bf16 %v861
          %v880 = vunpack.c.l.bf16 %v862
          %v881 = vunpack.c.h.bf16 %v862
          %v882 = vunpack.c.l.bf16 %v863
          %v883 = vunpack.c.h.bf16 %v863
          %v884 = vunpack.c.l.bf16 %v864
          %v885 = vunpack.c.h.bf16 %v864
          %v886 = vunpack.c.l.bf16 %v865
          %v887 = vunpack.c.h.bf16 %v865
          %v888 = vunpack.c.l.bf16 %v866
          %v889 = vunpack.c.h.bf16 %v866
          %v890 = vunpack.c.l.bf16 %v867
          %v891 = vunpack.c.h.bf16 %v867
          %v892 = vunpack.c.l.bf16 %v868
          %v893 = vunpack.c.h.bf16 %v868
          %v894 = vunpack.c.l.bf16 %v869
          %v895 = vunpack.c.h.bf16 %v869
          %v896 = vunpack.c.l.bf16 %v870
          %v897 = vunpack.c.h.bf16 %v870
          %v898 = vunpack.c.l.bf16 %v871
          %v899 = vunpack.c.h.bf16 %v871
          %v900 = vunpack.c.l.bf16 %v872
          %v901 = vunpack.c.h.bf16 %v872
          %v902 = vunpack.c.l.bf16 %v873
          %v903 = vunpack.c.h.bf16 %v873
          %v904 = vunpack.c.l.bf16 %v874
          %v905 = vunpack.c.h.bf16 %v874
          %v906 = vunpack.c.l.bf16 %v875
          %v907 = vunpack.c.h.bf16 %v875
          %v908 = vld [vmem:[%s3] sm:$0x3]
          %v909 = vmul.f32 %v876, %v876
          %v910 = vmul.f32 %v877, %v877
          %v911 = vmul.f32 %v878, %v878
          %v912 = vmul.f32 %v879, %v879
          %v913 = vmul.f32 %v880, %v880
          %v914 = vmul.f32 %v881, %v881
          %v915 = vmul.f32 %v882, %v882
          %v916 = vmul.f32 %v883, %v883
          %v917 = vmul.f32 %v884, %v884
          %v918 = vmul.f32 %v885, %v885
          %v919 = vmul.f32 %v886, %v886
          %v920 = vmul.f32 %v887, %v887
          %v921 = vmul.f32 %v888, %v888
          %v922 = vmul.f32 %v889, %v889
          %v923 = vmul.f32 %v890, %v890
          %v924 = vmul.f32 %v891, %v891
          %v925 = vmul.f32 %v892, %v892
          %v926 = vmul.f32 %v893, %v893
          %v927 = vmul.f32 %v894, %v894
          %v928 = vmul.f32 %v895, %v895
          %v929 = vmul.f32 %v896, %v896
          %v930 = vmul.f32 %v897, %v897
          %v931 = vmul.f32 %v898, %v898
          %v932 = vmul.f32 %v899, %v899
          %v933 = vmul.f32 %v900, %v900
          %v934 = vmul.f32 %v901, %v901
          %v935 = vmul.f32 %v902, %v902
          %v936 = vmul.f32 %v903, %v903
          %v937 = vmul.f32 %v904, %v904
          %v938 = vmul.f32 %v905, %v905
          %v939 = vmul.f32 %v906, %v906
          %v940 = vmul.f32 %v907, %v907
          %v941 = vadd.f32 %v909, %v910
          %942 = vadd.xlane.f32.xlu0 %v941
          %v943 = vpop.xlane.xlu0 %942
          %v944 = vadd.f32 %v911, %v912
          %945 = vadd.xlane.f32.xlu0 %v944
          %v946 = vpop.xlane.xlu0 %945
          %v947 = vadd.f32 %v913, %v914
          %948 = vadd.xlane.f32.xlu0 %v947
          %v949 = vpop.xlane.xlu0 %948
          %v950 = vadd.f32 %v915, %v916
          %951 = vadd.xlane.f32.xlu0 %v950
          %v952 = vpop.xlane.xlu0 %951
          %v953 = vadd.f32 %v917, %v918
          %954 = vadd.xlane.f32.xlu0 %v953
          %v955 = vpop.xlane.xlu0 %954
          %v956 = vadd.f32 %v919, %v920
          %957 = vadd.xlane.f32.xlu0 %v956
          %v958 = vpop.xlane.xlu0 %957
          %v959 = vadd.f32 %v921, %v922
          %960 = vadd.xlane.f32.xlu0 %v959
          %v961 = vpop.xlane.xlu0 %960
          %v962 = vadd.f32 %v923, %v924
          %963 = vadd.xlane.f32.xlu0 %v962
          %v964 = vpop.xlane.xlu0 %963
          %v965 = vadd.f32 %v925, %v926
          %966 = vadd.xlane.f32.xlu0 %v965
          %v967 = vpop.xlane.xlu0 %966
          %v968 = vadd.f32 %v927, %v928
          %969 = vadd.xlane.f32.xlu0 %v968
          %v970 = vpop.xlane.xlu0 %969
          %v971 = vadd.f32 %v929, %v930
          %972 = vadd.xlane.f32.xlu0 %v971
          %v973 = vpop.xlane.xlu0 %972
          %v974 = vadd.f32 %v931, %v932
          %975 = vadd.xlane.f32.xlu0 %v974
          %v976 = vpop.xlane.xlu0 %975
          %v977 = vadd.f32 %v933, %v934
          %978 = vadd.xlane.f32.xlu0 %v977
          %v979 = vpop.xlane.xlu0 %978
          %v980 = vadd.f32 %v935, %v936
          %981 = vadd.xlane.f32.xlu0 %v980
          %v982 = vpop.xlane.xlu0 %981
          %v983 = vadd.f32 %v937, %v938
          %984 = vadd.xlane.f32.xlu0 %v983
          %v985 = vpop.xlane.xlu0 %984
          %v986 = vadd.f32 %v939, %v940
          %987 = vadd.xlane.f32.xlu0 %v986
          %v988 = vpop.xlane.xlu0 %987
          %v989 = vmul.f32 %v943, %v566
          %v990 = vmul.f32 %v946, %v566
          %v991 = vmul.f32 %v949, %v566
          %v992 = vmul.f32 %v952, %v566
          %v993 = vmul.f32 %v955, %v566
          %v994 = vmul.f32 %v958, %v566
          %v995 = vmul.f32 %v961, %v566
          %v996 = vmul.f32 %v964, %v566
          %v997 = vmul.f32 %v967, %v566
          %v998 = vmul.f32 %v970, %v566
          %v999 = vmul.f32 %v973, %v566
          %v1000 = vmul.f32 %v976, %v566
          %v1001 = vmul.f32 %v979, %v566
          %v1002 = vmul.f32 %v982, %v566
          %v1003 = vmul.f32 %v985, %v566
          %v1004 = vmul.f32 %v988, %v566
          %v1005 = vadd.f32 %v989, 1e-06
          %v1006 = vadd.f32 %v990, 1e-06
          %v1007 = vadd.f32 %v991, 1e-06
          %v1008 = vadd.f32 %v992, 1e-06
          %v1009 = vadd.f32 %v993, 1e-06
          %v1010 = vadd.f32 %v994, 1e-06
          %v1011 = vadd.f32 %v995, 1e-06
          %v1012 = vadd.f32 %v996, 1e-06
          %v1013 = vadd.f32 %v997, 1e-06
          %v1014 = vadd.f32 %v998, 1e-06
          %v1015 = vadd.f32 %v999, 1e-06
          %v1016 = vadd.f32 %v1000, 1e-06
          %v1017 = vadd.f32 %v1001, 1e-06
          %v1018 = vadd.f32 %v1002, 1e-06
          %v1019 = vadd.f32 %v1003, 1e-06
          %v1020 = vadd.f32 %v1004, 1e-06
          %v1021 = vrsqrt.pop %v1005
          %v1022 = vmul.f32 %v1021, %v1005
          %v1023 = vmul.f32 %v1022, %v1021
          %v1024 = vmul.f32 0.5, %v1023
          %v1025 = vsub.f32 1.5, %v1024
          %v1026 = vmul.f32 %v1021, %v1025
          %vm1027 = vweird.f32 %v1005
          %vm1028 = vweird.f32 %v1021
          %vm1029 = vmor %vm1027, %vm1028
          %v1030 = vsel %vm1029, %v1021, %v1026
          %v1031 = vrsqrt.pop %v1006
          %v1032 = vmul.f32 %v1031, %v1006
          %v1033 = vmul.f32 %v1032, %v1031
          %v1034 = vmul.f32 0.5, %v1033
          %v1035 = vsub.f32 1.5, %v1034
          %v1036 = vmul.f32 %v1031, %v1035
          %vm1037 = vweird.f32 %v1006
          %vm1038 = vweird.f32 %v1031
          %vm1039 = vmor %vm1037, %vm1038
          %v1040 = vsel %vm1039, %v1031, %v1036
          %v1041 = vrsqrt.pop %v1007
          %v1042 = vmul.f32 %v1041, %v1007
          %v1043 = vmul.f32 %v1042, %v1041
          %v1044 = vmul.f32 0.5, %v1043
          %v1045 = vsub.f32 1.5, %v1044
          %v1046 = vmul.f32 %v1041, %v1045
          %vm1047 = vweird.f32 %v1007
          %vm1048 = vweird.f32 %v1041
          %vm1049 = vmor %vm1047, %vm1048
          %v1050 = vsel %vm1049, %v1041, %v1046
          %v1051 = vrsqrt.pop %v1008
          %v1052 = vmul.f32 %v1051, %v1008
          %v1053 = vmul.f32 %v1052, %v1051
          %v1054 = vmul.f32 0.5, %v1053
          %v1055 = vsub.f32 1.5, %v1054
          %v1056 = vmul.f32 %v1051, %v1055
          %vm1057 = vweird.f32 %v1008
          %vm1058 = vweird.f32 %v1051
          %vm1059 = vmor %vm1057, %vm1058
          %v1060 = vsel %vm1059, %v1051, %v1056
          %v1061 = vrsqrt.pop %v1009
          %v1062 = vmul.f32 %v1061, %v1009
          %v1063 = vmul.f32 %v1062, %v1061
          %v1064 = vmul.f32 0.5, %v1063
          %v1065 = vsub.f32 1.5, %v1064
          %v1066 = vmul.f32 %v1061, %v1065
          %vm1067 = vweird.f32 %v1009
          %vm1068 = vweird.f32 %v1061
          %vm1069 = vmor %vm1067, %vm1068
          %v1070 = vsel %vm1069, %v1061, %v1066
          %v1071 = vrsqrt.pop %v1010
          %v1072 = vmul.f32 %v1071, %v1010
          %v1073 = vmul.f32 %v1072, %v1071
          %v1074 = vmul.f32 0.5, %v1073
          %v1075 = vsub.f32 1.5, %v1074
          %v1076 = vmul.f32 %v1071, %v1075
          %vm1077 = vweird.f32 %v1010
          %vm1078 = vweird.f32 %v1071
          %vm1079 = vmor %vm1077, %vm1078
          %v1080 = vsel %vm1079, %v1071, %v1076
          %v1081 = vrsqrt.pop %v1011
          %v1082 = vmul.f32 %v1081, %v1011
          %v1083 = vmul.f32 %v1082, %v1081
          %v1084 = vmul.f32 0.5, %v1083
          %v1085 = vsub.f32 1.5, %v1084
          %v1086 = vmul.f32 %v1081, %v1085
          %vm1087 = vweird.f32 %v1011
          %vm1088 = vweird.f32 %v1081
          %vm1089 = vmor %vm1087, %vm1088
          %v1090 = vsel %vm1089, %v1081, %v1086
          %v1091 = vrsqrt.pop %v1012
          %v1092 = vmul.f32 %v1091, %v1012
          %v1093 = vmul.f32 %v1092, %v1091
          %v1094 = vmul.f32 0.5, %v1093
          %v1095 = vsub.f32 1.5, %v1094
          %v1096 = vmul.f32 %v1091, %v1095
          %vm1097 = vweird.f32 %v1012
          %vm1098 = vweird.f32 %v1091
          %vm1099 = vmor %vm1097, %vm1098
          %v1100 = vsel %vm1099, %v1091, %v1096
          %v1101 = vrsqrt.pop %v1013
          %v1102 = vmul.f32 %v1101, %v1013
          %v1103 = vmul.f32 %v1102, %v1101
          %v1104 = vmul.f32 0.5, %v1103
          %v1105 = vsub.f32 1.5, %v1104
          %v1106 = vmul.f32 %v1101, %v1105
          %vm1107 = vweird.f32 %v1013
          %vm1108 = vweird.f32 %v1101
          %vm1109 = vmor %vm1107, %vm1108
          %v1110 = vsel %vm1109, %v1101, %v1106
          %v1111 = vrsqrt.pop %v1014
          %v1112 = vmul.f32 %v1111, %v1014
          %v1113 = vmul.f32 %v1112, %v1111
          %v1114 = vmul.f32 0.5, %v1113
          %v1115 = vsub.f32 1.5, %v1114
          %v1116 = vmul.f32 %v1111, %v1115
          %vm1117 = vweird.f32 %v1014
          %vm1118 = vweird.f32 %v1111
          %vm1119 = vmor %vm1117, %vm1118
          %v1120 = vsel %vm1119, %v1111, %v1116
          %v1121 = vrsqrt.pop %v1015
          %v1122 = vmul.f32 %v1121, %v1015
          %v1123 = vmul.f32 %v1122, %v1121
          %v1124 = vmul.f32 0.5, %v1123
          %v1125 = vsub.f32 1.5, %v1124
          %v1126 = vmul.f32 %v1121, %v1125
          %vm1127 = vweird.f32 %v1015
          %vm1128 = vweird.f32 %v1121
          %vm1129 = vmor %vm1127, %vm1128
          %v1130 = vsel %vm1129, %v1121, %v1126
          %v1131 = vrsqrt.pop %v1016
          %v1132 = vmul.f32 %v1131, %v1016
          %v1133 = vmul.f32 %v1132, %v1131
          %v1134 = vmul.f32 0.5, %v1133
          %v1135 = vsub.f32 1.5, %v1134
          %v1136 = vmul.f32 %v1131, %v1135
          %vm1137 = vweird.f32 %v1016
          %vm1138 = vweird.f32 %v1131
          %vm1139 = vmor %vm1137, %vm1138
          %v1140 = vsel %vm1139, %v1131, %v1136
          %v1141 = vrsqrt.pop %v1017
          %v1142 = vmul.f32 %v1141, %v1017
          %v1143 = vmul.f32 %v1142, %v1141
          %v1144 = vmul.f32 0.5, %v1143
          %v1145 = vsub.f32 1.5, %v1144
          %v1146 = vmul.f32 %v1141, %v1145
          %vm1147 = vweird.f32 %v1017
          %vm1148 = vweird.f32 %v1141
          %vm1149 = vmor %vm1147, %vm1148
          %v1150 = vsel %vm1149, %v1141, %v1146
          %v1151 = vrsqrt.pop %v1018
          %v1152 = vmul.f32 %v1151, %v1018
          %v1153 = vmul.f32 %v1152, %v1151
          %v1154 = vmul.f32 0.5, %v1153
          %v1155 = vsub.f32 1.5, %v1154
          %v1156 = vmul.f32 %v1151, %v1155
          %vm1157 = vweird.f32 %v1018
          %vm1158 = vweird.f32 %v1151
          %vm1159 = vmor %vm1157, %vm1158
          %v1160 = vsel %vm1159, %v1151, %v1156
          %v1161 = vrsqrt.pop %v1019
          %v1162 = vmul.f32 %v1161, %v1019
          %v1163 = vmul.f32 %v1162, %v1161
          %v1164 = vmul.f32 0.5, %v1163
          %v1165 = vsub.f32 1.5, %v1164
          %v1166 = vmul.f32 %v1161, %v1165
          %vm1167 = vweird.f32 %v1019
          %vm1168 = vweird.f32 %v1161
          %vm1169 = vmor %vm1167, %vm1168
          %v1170 = vsel %vm1169, %v1161, %v1166
          %v1171 = vrsqrt.pop %v1020
          %v1172 = vmul.f32 %v1171, %v1020
          %v1173 = vmul.f32 %v1172, %v1171
          %v1174 = vmul.f32 0.5, %v1173
          %v1175 = vsub.f32 1.5, %v1174
          %v1176 = vmul.f32 %v1171, %v1175
          %vm1177 = vweird.f32 %v1020
          %vm1178 = vweird.f32 %v1171
          %vm1179 = vmor %vm1177, %vm1178
          %v1180 = vsel %vm1179, %v1171, %v1176
          %v1181 = vmul.f32 %v876, %v1030
          %v1182 = vmul.f32 %v877, %v1030
          %v1183 = vmul.f32 %v878, %v1040
          %v1184 = vmul.f32 %v879, %v1040
          %v1185 = vmul.f32 %v880, %v1050
          %v1186 = vmul.f32 %v881, %v1050
          %v1187 = vmul.f32 %v882, %v1060
          %v1188 = vmul.f32 %v883, %v1060
          %v1189 = vmul.f32 %v884, %v1070
          %v1190 = vmul.f32 %v885, %v1070
          %v1191 = vmul.f32 %v886, %v1080
          %v1192 = vmul.f32 %v887, %v1080
          %v1193 = vmul.f32 %v888, %v1090
          %v1194 = vmul.f32 %v889, %v1090
          %v1195 = vmul.f32 %v890, %v1100
          %v1196 = vmul.f32 %v891, %v1100
          %v1197 = vmul.f32 %v892, %v1110
          %v1198 = vmul.f32 %v893, %v1110
          %v1199 = vmul.f32 %v894, %v1120
          %v1200 = vmul.f32 %v895, %v1120
          %v1201 = vmul.f32 %v896, %v1130
          %v1202 = vmul.f32 %v897, %v1130
          %v1203 = vmul.f32 %v898, %v1140
          %v1204 = vmul.f32 %v899, %v1140
          %v1205 = vmul.f32 %v900, %v1150
          %v1206 = vmul.f32 %v901, %v1150
          %v1207 = vmul.f32 %v902, %v1160
          %v1208 = vmul.f32 %v903, %v1160
          %v1209 = vmul.f32 %v904, %v1170
          %v1210 = vmul.f32 %v905, %v1170
          %v1211 = vmul.f32 %v906, %v1180
          %v1212 = vmul.f32 %v907, %v1180
          %v1214 = vperm.slane %v908, 0
          %v1215 = vperm.slane %v908, 1
          %v1218 = vmul.f32 %v1181, %v1214
          %v1219 = vmul.f32 %v1182, %v1215
          %v1220 = vmul.f32 %v1183, %v1214
          %v1221 = vmul.f32 %v1184, %v1215
          %v1222 = vmul.f32 %v1185, %v1214
          %v1223 = vmul.f32 %v1186, %v1215
          %v1224 = vmul.f32 %v1187, %v1214
          %v1225 = vmul.f32 %v1188, %v1215
          %v1226 = vmul.f32 %v1189, %v1214
          %v1227 = vmul.f32 %v1190, %v1215
          %v1228 = vmul.f32 %v1191, %v1214
          %v1229 = vmul.f32 %v1192, %v1215
          %v1230 = vmul.f32 %v1193, %v1214
          %v1231 = vmul.f32 %v1194, %v1215
          %v1232 = vmul.f32 %v1195, %v1214
          %v1233 = vmul.f32 %v1196, %v1215
          %v1234 = vmul.f32 %v1197, %v1214
          %v1235 = vmul.f32 %v1198, %v1215
          %v1236 = vmul.f32 %v1199, %v1214
          %v1237 = vmul.f32 %v1200, %v1215
          %v1238 = vmul.f32 %v1201, %v1214
          %v1239 = vmul.f32 %v1202, %v1215
          %v1240 = vmul.f32 %v1203, %v1214
          %v1241 = vmul.f32 %v1204, %v1215
          %v1242 = vmul.f32 %v1205, %v1214
          %v1243 = vmul.f32 %v1206, %v1215
          %v1244 = vmul.f32 %v1207, %v1214
          %v1245 = vmul.f32 %v1208, %v1215
          %v1246 = vmul.f32 %v1209, %v1214
          %v1247 = vmul.f32 %v1210, %v1215
          %v1248 = vmul.f32 %v1211, %v1214
          %v1249 = vmul.f32 %v1212, %v1215
          %v1250 = vpack.c.bf16 %v1219, %v1218
          %v1251 = vpack.c.bf16 %v1221, %v1220
          %v1252 = vpack.c.bf16 %v1223, %v1222
          %v1253 = vpack.c.bf16 %v1225, %v1224
          %v1254 = vpack.c.bf16 %v1227, %v1226
          %v1255 = vpack.c.bf16 %v1229, %v1228
          %v1256 = vpack.c.bf16 %v1231, %v1230
          %v1257 = vpack.c.bf16 %v1233, %v1232
          %v1258 = vpack.c.bf16 %v1235, %v1234
          %v1259 = vpack.c.bf16 %v1237, %v1236
          %v1260 = vpack.c.bf16 %v1239, %v1238
          %v1261 = vpack.c.bf16 %v1241, %v1240
          %v1262 = vpack.c.bf16 %v1243, %v1242
          %v1263 = vpack.c.bf16 %v1245, %v1244
          %v1264 = vpack.c.bf16 %v1247, %v1246
          %v1265 = vpack.c.bf16 %v1249, %v1248
          %1266 = vst [vmem:[#allocation3] sm:$0xff] %v1250
          %1267 = vst [vmem:[#allocation3 + $0x8] sm:$0xff] %v1251
          %1268 = vst [vmem:[#allocation3 + $0x10] sm:$0xff] %v1252
          %1269 = vst [vmem:[#allocation3 + $0x18] sm:$0xff] %v1253
          %1270 = vst [vmem:[#allocation3 + $0x20] sm:$0xff] %v1254
          %1271 = vst [vmem:[#allocation3 + $0x28] sm:$0xff] %v1255
          %1272 = vst [vmem:[#allocation3 + $0x30] sm:$0xff] %v1256
          %1273 = vst [vmem:[#allocation3 + $0x38] sm:$0xff] %v1257
          %1274 = vst [vmem:[#allocation3 + $0x40] sm:$0xff] %v1258
          %1275 = vst [vmem:[#allocation3 + $0x48] sm:$0xff] %v1259
          %1276 = vst [vmem:[#allocation3 + $0x50] sm:$0xff] %v1260
          %1277 = vst [vmem:[#allocation3 + $0x58] sm:$0xff] %v1261
          %1278 = vst [vmem:[#allocation3 + $0x60] sm:$0xff] %v1262
          %1279 = vst [vmem:[#allocation3 + $0x68] sm:$0xff] %v1263
          %1280 = vst [vmem:[#allocation3 + $0x70] sm:$0xff] %v1264
          %1281 = vst [vmem:[#allocation3 + $0x78] sm:$0xff] %v1265
        $region68: #{tpu_custom_call.1} parent=43 // pred_fallthru
          _
        %v1282 = vld [vmem:[#allocation3] sm:$0xff]
        %v1283 = vld [vmem:[#allocation3 + $0x8] sm:$0xff]
        %v1284 = vld [vmem:[#allocation3 + $0x10] sm:$0xff]
        %v1285 = vld [vmem:[#allocation3 + $0x18] sm:$0xff]
        %v1286 = vld [vmem:[#allocation3 + $0x20] sm:$0xff]
        %v1287 = vld [vmem:[#allocation3 + $0x28] sm:$0xff]
        %v1288 = vld [vmem:[#allocation3 + $0x30] sm:$0xff]
        %v1289 = vld [vmem:[#allocation3 + $0x38] sm:$0xff]
        %v1290 = vld [vmem:[#allocation3 + $0x40] sm:$0xff]
        %v1291 = vld [vmem:[#allocation3 + $0x48] sm:$0xff]
        %v1292 = vld [vmem:[#allocation3 + $0x50] sm:$0xff]
        %v1293 = vld [vmem:[#allocation3 + $0x58] sm:$0xff]
        %v1294 = vld [vmem:[#allocation3 + $0x60] sm:$0xff]
        %v1295 = vld [vmem:[#allocation3 + $0x68] sm:$0xff]
        %v1296 = vld [vmem:[#allocation3 + $0x70] sm:$0xff]
        %v1297 = vld [vmem:[#allocation3 + $0x78] sm:$0xff]
        %v1298 = vld [vmem:[%s369] sm:$0xf]
        %v1299 = vld [vmem:[%s369 + $0x4] sm:$0xf]
        %v1300 = vld [vmem:[%s369 + $0x8] sm:$0xf]
        %v1301 = vld [vmem:[%s369 + $0xc] sm:$0xf]
        %v1302 = vld [vmem:[%s369 + $0x10] sm:$0xf]
        %v1303 = vld [vmem:[%s369 + $0x14] sm:$0xf]
        %v1304 = vld [vmem:[%s369 + $0x18] sm:$0xf]
        %v1305 = vld [vmem:[%s369 + $0x1c] sm:$0xf]
        %v1306 = vld [vmem:[%s369 + $0x20] sm:$0xf]
        %v1307 = vld [vmem:[%s369 + $0x24] sm:$0xf]
        %v1308 = vld [vmem:[%s369 + $0x28] sm:$0xf]
        %v1309 = vld [vmem:[%s369 + $0x2c] sm:$0xf]
        %v1310 = vld [vmem:[%s369 + $0x30] sm:$0xf]
        %v1311 = vld [vmem:[%s369 + $0x34] sm:$0xf]
        %v1312 = vld [vmem:[%s369 + $0x38] sm:$0xf]
        %v1313 = vld [vmem:[%s369 + $0x3c] sm:$0xf]
        %v1314 = vld [vmem:[%s369 + $0x40] sm:$0xf]
        %v1315 = vld [vmem:[%s369 + $0x44] sm:$0xf]
        %v1316 = vld [vmem:[%s369 + $0x48] sm:$0xf]
        %v1317 = vld [vmem:[%s369 + $0x4c] sm:$0xf]
        %v1318 = vld [vmem:[%s369 + $0x50] sm:$0xf]
        %v1319 = vld [vmem:[%s369 + $0x54] sm:$0xf]
        %v1320 = vld [vmem:[%s369 + $0x58] sm:$0xf]
        %v1321 = vld [vmem:[%s369 + $0x5c] sm:$0xf]
        %v1322 = vld [vmem:[%s369 + $0x60] sm:$0xf]
        %v1323 = vld [vmem:[%s369 + $0x64] sm:$0xf]
        %v1324 = vld [vmem:[%s369 + $0x68] sm:$0xf]
        %v1325 = vld [vmem:[%s369 + $0x6c] sm:$0xf]
        %v1326 = vld [vmem:[%s369 + $0x70] sm:$0xf]
        %v1327 = vld [vmem:[%s369 + $0x74] sm:$0xf]
        %v1328 = vld [vmem:[%s369 + $0x78] sm:$0xf]
        %v1329 = vld [vmem:[%s369 + $0x7c] sm:$0xf]
        %v1330 = vld [vmem:[#allocation2] sm:$0xff]
        %v1331 = vld [vmem:[#allocation2 + $0x8] sm:$0xff]
        %v1332 = vld [vmem:[#allocation2 + $0x10] sm:$0xff]
        %v1333 = vld [vmem:[#allocation2 + $0x18] sm:$0xff]
        %v1334 = vld [vmem:[#allocation2 + $0x20] sm:$0xff]
        %v1335 = vld [vmem:[#allocation2 + $0x28] sm:$0xff]
        %v1336 = vld [vmem:[#allocation2 + $0x30] sm:$0xff]
        %v1337 = vld [vmem:[#allocation2 + $0x38] sm:$0xff]
        %v1338 = vld [vmem:[#allocation2 + $0x40] sm:$0xff]
        %v1339 = vld [vmem:[#allocation2 + $0x48] sm:$0xff]
        %v1340 = vld [vmem:[#allocation2 + $0x50] sm:$0xff]
        %v1341 = vld [vmem:[#allocation2 + $0x58] sm:$0xff]
        %v1342 = vld [vmem:[#allocation2 + $0x60] sm:$0xff]
        %v1343 = vld [vmem:[#allocation2 + $0x68] sm:$0xff]
        %v1344 = vld [vmem:[#allocation2 + $0x70] sm:$0xff]
        %v1345 = vld [vmem:[#allocation2 + $0x78] sm:$0xff]
        %v1346 = vld [vmem:[%s379] sm:$0xf]
        %v1347 = vld [vmem:[%s379 + $0x4] sm:$0xf]
        %v1348 = vld [vmem:[%s379 + $0x8] sm:$0xf]
        %v1349 = vld [vmem:[%s379 + $0xc] sm:$0xf]
        %v1350 = vld [vmem:[%s379 + $0x10] sm:$0xf]
        %v1351 = vld [vmem:[%s379 + $0x14] sm:$0xf]
        %v1352 = vld [vmem:[%s379 + $0x18] sm:$0xf]
        %v1353 = vld [vmem:[%s379 + $0x1c] sm:$0xf]
        %v1354 = vld [vmem:[%s379 + $0x20] sm:$0xf]
        %v1355 = vld [vmem:[%s379 + $0x24] sm:$0xf]
        %v1356 = vld [vmem:[%s379 + $0x28] sm:$0xf]
        %v1357 = vld [vmem:[%s379 + $0x2c] sm:$0xf]
        %v1358 = vld [vmem:[%s379 + $0x30] sm:$0xf]
        %v1359 = vld [vmem:[%s379 + $0x34] sm:$0xf]
        %v1360 = vld [vmem:[%s379 + $0x38] sm:$0xf]
        %v1361 = vld [vmem:[%s379 + $0x3c] sm:$0xf]
        %v1362 = vld [vmem:[%s379 + $0x40] sm:$0xf]
        %v1363 = vld [vmem:[%s379 + $0x44] sm:$0xf]
        %v1364 = vld [vmem:[%s379 + $0x48] sm:$0xf]
        %v1365 = vld [vmem:[%s379 + $0x4c] sm:$0xf]
        %v1366 = vld [vmem:[%s379 + $0x50] sm:$0xf]
        %v1367 = vld [vmem:[%s379 + $0x54] sm:$0xf]
        %v1368 = vld [vmem:[%s379 + $0x58] sm:$0xf]
        %v1369 = vld [vmem:[%s379 + $0x5c] sm:$0xf]
        %v1370 = vld [vmem:[%s379 + $0x60] sm:$0xf]
        %v1371 = vld [vmem:[%s379 + $0x64] sm:$0xf]
        %v1372 = vld [vmem:[%s379 + $0x68] sm:$0xf]
        %v1373 = vld [vmem:[%s379 + $0x6c] sm:$0xf]
        %v1374 = vld [vmem:[%s379 + $0x70] sm:$0xf]
        %v1375 = vld [vmem:[%s379 + $0x74] sm:$0xf]
        %v1376 = vld [vmem:[%s379 + $0x78] sm:$0xf]
        %v1377 = vld [vmem:[%s379 + $0x7c] sm:$0xf]
        %v1394 = vunpack.c.l.b16 %v1330
        %v1395 = vunpack.c.h.b16 %v1330
        %v1396 = vunpack.c.l.b16 %v1331
        %v1397 = vunpack.c.h.b16 %v1331
        %v1398 = vunpack.c.l.b16 %v1332
        %v1399 = vunpack.c.h.b16 %v1332
        %v1400 = vunpack.c.l.b16 %v1333
        %v1401 = vunpack.c.h.b16 %v1333
        %v1402 = vunpack.c.l.b16 %v1334
        %v1403 = vunpack.c.h.b16 %v1334
        %v1404 = vunpack.c.l.b16 %v1335
        %v1405 = vunpack.c.h.b16 %v1335
        %v1406 = vunpack.c.l.b16 %v1336
        %v1407 = vunpack.c.h.b16 %v1336
        %v1408 = vunpack.c.l.b16 %v1337
        %v1409 = vunpack.c.h.b16 %v1337
        %v1410 = vunpack.c.l.b16 %v1338
        %v1411 = vunpack.c.h.b16 %v1338
        %v1412 = vunpack.c.l.b16 %v1339
        %v1413 = vunpack.c.h.b16 %v1339
        %v1414 = vunpack.c.l.b16 %v1340
        %v1415 = vunpack.c.h.b16 %v1340
        %v1416 = vunpack.c.l.b16 %v1341
        %v1417 = vunpack.c.h.b16 %v1341
        %v1418 = vunpack.c.l.b16 %v1342
        %v1419 = vunpack.c.h.b16 %v1342
        %v1420 = vunpack.c.l.b16 %v1343
        %v1421 = vunpack.c.h.b16 %v1343
        %v1422 = vunpack.c.l.b16 %v1344
        %v1423 = vunpack.c.h.b16 %v1344
        %v1424 = vunpack.c.l.b16 %v1345
        %v1425 = vunpack.c.h.b16 %v1345
        %v1426 = vpack.c.b16 %v1396, %v1394
        %v1427 = vpack.c.b16 %v1397, %v1395
        %v1428 = vpack.c.b16 %v1400, %v1398
        %v1429 = vpack.c.b16 %v1401, %v1399
        %v1430 = vpack.c.b16 %v1404, %v1402
        %v1431 = vpack.c.b16 %v1405, %v1403
        %v1432 = vpack.c.b16 %v1408, %v1406
        %v1433 = vpack.c.b16 %v1409, %v1407
        %v1434 = vpack.c.b16 %v1412, %v1410
        %v1435 = vpack.c.b16 %v1413, %v1411
        %v1436 = vpack.c.b16 %v1416, %v1414
        %v1437 = vpack.c.b16 %v1417, %v1415
        %v1438 = vpack.c.b16 %v1420, %v1418
        %v1439 = vpack.c.b16 %v1421, %v1419
        %v1440 = vpack.c.b16 %v1424, %v1422
        %v1441 = vpack.c.b16 %v1425, %v1423
        %v1490 = vunpack.c.l.b16 %v1346
        %v1491 = vunpack.c.l.b16 %v1347
        %v1492 = vunpack.c.l.b16 %v1348
        %v1493 = vunpack.c.l.b16 %v1349
        %v1494 = vunpack.c.l.b16 %v1350
        %v1495 = vunpack.c.l.b16 %v1351
        %v1496 = vunpack.c.l.b16 %v1352
        %v1497 = vunpack.c.l.b16 %v1353
        %v1498 = vunpack.c.l.b16 %v1354
        %v1499 = vunpack.c.l.b16 %v1355
        %v1500 = vunpack.c.l.b16 %v1356
        %v1501 = vunpack.c.l.b16 %v1357
        %v1502 = vunpack.c.l.b16 %v1358
        %v1503 = vunpack.c.l.b16 %v1359
        %v1504 = vunpack.c.l.b16 %v1360
        %v1505 = vunpack.c.l.b16 %v1361
        %v1506 = vunpack.c.l.b16 %v1362
        %v1507 = vunpack.c.l.b16 %v1363
        %v1508 = vunpack.c.l.b16 %v1364
        %v1509 = vunpack.c.l.b16 %v1365
        %v1510 = vunpack.c.l.b16 %v1366
        %v1511 = vunpack.c.l.b16 %v1367
        %v1512 = vunpack.c.l.b16 %v1368
        %v1513 = vunpack.c.l.b16 %v1369
        %v1514 = vunpack.c.l.b16 %v1370
        %v1515 = vunpack.c.l.b16 %v1371
        %v1516 = vunpack.c.l.b16 %v1372
        %v1517 = vunpack.c.l.b16 %v1373
        %v1518 = vunpack.c.l.b16 %v1374
        %v1519 = vunpack.c.l.b16 %v1375
        %v1520 = vunpack.c.l.b16 %v1376
        %v1521 = vunpack.c.l.b16 %v1377
        %v1522 = vpack.c.b16 %v1491, %v1490
        %v1523 = vpack.c.b16 %v1493, %v1492
        %v1524 = vpack.c.b16 %v1495, %v1494
        %v1525 = vpack.c.b16 %v1497, %v1496
        %v1526 = vpack.c.b16 %v1499, %v1498
        %v1527 = vpack.c.b16 %v1501, %v1500
        %v1528 = vpack.c.b16 %v1503, %v1502
        %v1529 = vpack.c.b16 %v1505, %v1504
        %v1530 = vpack.c.b16 %v1507, %v1506
        %v1531 = vpack.c.b16 %v1509, %v1508
        %v1532 = vpack.c.b16 %v1511, %v1510
        %v1533 = vpack.c.b16 %v1513, %v1512
        %v1534 = vpack.c.b16 %v1515, %v1514
        %v1535 = vpack.c.b16 %v1517, %v1516
        %v1536 = vpack.c.b16 %v1519, %v1518
        %v1537 = vpack.c.b16 %v1521, %v1520
        %1554 = vmatpush.bf16.msra.mxu0 %v1529
        %1555 = vmatpush.bf16.msra.mxu0 %v1528
        %1556 = vmatpush.bf16.msra.mxu0 %v1527
        %1557 = vmatpush.bf16.msra.mxu0 %v1526
        %1558 = vmatpush.bf16.msra.mxu0 %v1525
        %1559 = vmatpush.bf16.msra.mxu0 %v1524
        %1560 = vmatpush.bf16.msra.mxu0 %v1523
        %1561 = vmatpush.bf16.msra.mxu0 %v1522
        %1562 = vmatmul.bf16.gmra.mxu0 %v1426
        %v1563 = vpop.f32.mrf.mxu0
        %v1564 = vadd.f32 0.0, %v1563
        %v1565 = vpop.f32.mrf.mxu0
        %v1566 = vadd.f32 0.0, %v1565
        %1567 = vmatmul.bf16.gmra.mxu0 %v1428
        %v1568 = vpop.f32.mrf.mxu0
        %v1569 = vadd.f32 0.0, %v1568
        %v1570 = vpop.f32.mrf.mxu0
        %v1571 = vadd.f32 0.0, %v1570
        %1572 = vmatmul.bf16.gmra.mxu0 %v1430
        %v1573 = vpop.f32.mrf.mxu0
        %v1574 = vadd.f32 0.0, %v1573
        %v1575 = vpop.f32.mrf.mxu0
        %v1576 = vadd.f32 0.0, %v1575
        %1577 = vmatmul.bf16.gmra.mxu0 %v1432
        %v1578 = vpop.f32.mrf.mxu0
        %v1579 = vadd.f32 0.0, %v1578
        %v1580 = vpop.f32.mrf.mxu0
        %v1581 = vadd.f32 0.0, %v1580
        %1582 = vmatmul.bf16.gmra.mxu0 %v1434
        %v1583 = vpop.f32.mrf.mxu0
        %v1584 = vadd.f32 0.0, %v1583
        %v1585 = vpop.f32.mrf.mxu0
        %v1586 = vadd.f32 0.0, %v1585
        %1587 = vmatmul.bf16.gmra.mxu0 %v1436
        %v1588 = vpop.f32.mrf.mxu0
        %v1589 = vadd.f32 0.0, %v1588
        %v1590 = vpop.f32.mrf.mxu0
        %v1591 = vadd.f32 0.0, %v1590
        %1592 = vmatmul.bf16.gmra.mxu0 %v1438
        %v1593 = vpop.f32.mrf.mxu0
        %v1594 = vadd.f32 0.0, %v1593
        %v1595 = vpop.f32.mrf.mxu0
        %v1596 = vadd.f32 0.0, %v1595
        %1597 = vmatmul.bf16.gmra.mxu0 %v1440
        %v1598 = vpop.f32.mrf.mxu0
        %v1599 = vadd.f32 0.0, %v1598
        %v1600 = vpop.f32.mrf.mxu0
        %v1601 = vadd.f32 0.0, %v1600
        %1602 = vdwg.mxu0
        %1603 = vmatpush.bf16.msra.mxu0 %v1537
        %1604 = vmatpush.bf16.msra.mxu0 %v1536
        %1605 = vmatpush.bf16.msra.mxu0 %v1535
        %1606 = vmatpush.bf16.msra.mxu0 %v1534
        %1607 = vmatpush.bf16.msra.mxu0 %v1533
        %1608 = vmatpush.bf16.msra.mxu0 %v1532
        %1609 = vmatpush.bf16.msra.mxu0 %v1531
        %1610 = vmatpush.bf16.msra.mxu0 %v1530
        %1611 = vmatmul.bf16.gmra.mxu0 %v1427
        %v1612 = vpop.f32.mrf.mxu0
        %v1613 = vadd.f32 %v1564, %v1612
        %v1614 = vpop.f32.mrf.mxu0
        %v1615 = vadd.f32 %v1566, %v1614
        %1616 = vmatmul.bf16.gmra.mxu0 %v1429
        %v1617 = vpop.f32.mrf.mxu0
        %v1618 = vadd.f32 %v1569, %v1617
        %v1619 = vpop.f32.mrf.mxu0
        %v1620 = vadd.f32 %v1571, %v1619
        %1621 = vmatmul.bf16.gmra.mxu0 %v1431
        %v1622 = vpop.f32.mrf.mxu0
        %v1623 = vadd.f32 %v1574, %v1622
        %v1624 = vpop.f32.mrf.mxu0
        %v1625 = vadd.f32 %v1576, %v1624
        %1626 = vmatmul.bf16.gmra.mxu0 %v1433
        %v1627 = vpop.f32.mrf.mxu0
        %v1628 = vadd.f32 %v1579, %v1627
        %v1629 = vpop.f32.mrf.mxu0
        %v1630 = vadd.f32 %v1581, %v1629
        %1631 = vmatmul.bf16.gmra.mxu0 %v1435
        %v1632 = vpop.f32.mrf.mxu0
        %v1633 = vadd.f32 %v1584, %v1632
        %v1634 = vpop.f32.mrf.mxu0
        %v1635 = vadd.f32 %v1586, %v1634
        %1636 = vmatmul.bf16.gmra.mxu0 %v1437
        %v1637 = vpop.f32.mrf.mxu0
        %v1638 = vadd.f32 %v1589, %v1637
        %v1639 = vpop.f32.mrf.mxu0
        %v1640 = vadd.f32 %v1591, %v1639
        %1641 = vmatmul.bf16.gmra.mxu0 %v1439
        %v1642 = vpop.f32.mrf.mxu0
        %v1643 = vadd.f32 %v1594, %v1642
        %v1644 = vpop.f32.mrf.mxu0
        %v1645 = vadd.f32 %v1596, %v1644
        %1646 = vmatmul.bf16.gmra.mxu0 %v1441
        %v1647 = vpop.f32.mrf.mxu0
        %v1648 = vadd.f32 %v1599, %v1647
        %v1649 = vpop.f32.mrf.mxu0
        %v1650 = vadd.f32 %v1601, %v1649
        %1651 = vdwg.mxu0
        %v1668 = vunpack.c.l.b16 %v1282
        %v1669 = vunpack.c.h.b16 %v1282
        %v1670 = vunpack.c.l.b16 %v1283
        %v1671 = vunpack.c.h.b16 %v1283
        %v1672 = vunpack.c.l.b16 %v1284
        %v1673 = vunpack.c.h.b16 %v1284
        %v1674 = vunpack.c.l.b16 %v1285
        %v1675 = vunpack.c.h.b16 %v1285
        %v1676 = vunpack.c.l.b16 %v1286
        %v1677 = vunpack.c.h.b16 %v1286
        %v1678 = vunpack.c.l.b16 %v1287
        %v1679 = vunpack.c.h.b16 %v1287
        %v1680 = vunpack.c.l.b16 %v1288
        %v1681 = vunpack.c.h.b16 %v1288
        %v1682 = vunpack.c.l.b16 %v1289
        %v1683 = vunpack.c.h.b16 %v1289
        %v1684 = vunpack.c.l.b16 %v1290
        %v1685 = vunpack.c.h.b16 %v1290
        %v1686 = vunpack.c.l.b16 %v1291
        %v1687 = vunpack.c.h.b16 %v1291
        %v1688 = vunpack.c.l.b16 %v1292
        %v1689 = vunpack.c.h.b16 %v1292
        %v1690 = vunpack.c.l.b16 %v1293
        %v1691 = vunpack.c.h.b16 %v1293
        %v1692 = vunpack.c.l.b16 %v1294
        %v1693 = vunpack.c.h.b16 %v1294
        %v1694 = vunpack.c.l.b16 %v1295
        %v1695 = vunpack.c.h.b16 %v1295
        %v1696 = vunpack.c.l.b16 %v1296
        %v1697 = vunpack.c.h.b16 %v1296
        %v1698 = vunpack.c.l.b16 %v1297
        %v1699 = vunpack.c.h.b16 %v1297
        %v1700 = vpack.c.b16 %v1670, %v1668
        %v1701 = vpack.c.b16 %v1671, %v1669
        %v1702 = vpack.c.b16 %v1674, %v1672
        %v1703 = vpack.c.b16 %v1675, %v1673
        %v1704 = vpack.c.b16 %v1678, %v1676
        %v1705 = vpack.c.b16 %v1679, %v1677
        %v1706 = vpack.c.b16 %v1682, %v1680
        %v1707 = vpack.c.b16 %v1683, %v1681
        %v1708 = vpack.c.b16 %v1686, %v1684
        %v1709 = vpack.c.b16 %v1687, %v1685
        %v1710 = vpack.c.b16 %v1690, %v1688
        %v1711 = vpack.c.b16 %v1691, %v1689
        %v1712 = vpack.c.b16 %v1694, %v1692
        %v1713 = vpack.c.b16 %v1695, %v1693
        %v1714 = vpack.c.b16 %v1698, %v1696
        %v1715 = vpack.c.b16 %v1699, %v1697
        %v1764 = vunpack.c.l.b16 %v1298
        %v1765 = vunpack.c.l.b16 %v1299
        %v1766 = vunpack.c.l.b16 %v1300
        %v1767 = vunpack.c.l.b16 %v1301
        %v1768 = vunpack.c.l.b16 %v1302
        %v1769 = vunpack.c.l.b16 %v1303
        %v1770 = vunpack.c.l.b16 %v1304
        %v1771 = vunpack.c.l.b16 %v1305
        %v1772 = vunpack.c.l.b16 %v1306
        %v1773 = vunpack.c.l.b16 %v1307
        %v1774 = vunpack.c.l.b16 %v1308
        %v1775 = vunpack.c.l.b16 %v1309
        %v1776 = vunpack.c.l.b16 %v1310
        %v1777 = vunpack.c.l.b16 %v1311
        %v1778 = vunpack.c.l.b16 %v1312
        %v1779 = vunpack.c.l.b16 %v1313
        %v1780 = vunpack.c.l.b16 %v1314
        %v1781 = vunpack.c.l.b16 %v1315
        %v1782 = vunpack.c.l.b16 %v1316
        %v1783 = vunpack.c.l.b16 %v1317
        %v1784 = vunpack.c.l.b16 %v1318
        %v1785 = vunpack.c.l.b16 %v1319
        %v1786 = vunpack.c.l.b16 %v1320
        %v1787 = vunpack.c.l.b16 %v1321
        %v1788 = vunpack.c.l.b16 %v1322
        %v1789 = vunpack.c.l.b16 %v1323
        %v1790 = vunpack.c.l.b16 %v1324
        %v1791 = vunpack.c.l.b16 %v1325
        %v1792 = vunpack.c.l.b16 %v1326
        %v1793 = vunpack.c.l.b16 %v1327
        %v1794 = vunpack.c.l.b16 %v1328
        %v1795 = vunpack.c.l.b16 %v1329
        %v1796 = vpack.c.b16 %v1765, %v1764
        %v1797 = vpack.c.b16 %v1767, %v1766
        %v1798 = vpack.c.b16 %v1769, %v1768
        %v1799 = vpack.c.b16 %v1771, %v1770
        %v1800 = vpack.c.b16 %v1773, %v1772
        %v1801 = vpack.c.b16 %v1775, %v1774
        %v1802 = vpack.c.b16 %v1777, %v1776
        %v1803 = vpack.c.b16 %v1779, %v1778
        %v1804 = vpack.c.b16 %v1781, %v1780
        %v1805 = vpack.c.b16 %v1783, %v1782
        %v1806 = vpack.c.b16 %v1785, %v1784
        %v1807 = vpack.c.b16 %v1787, %v1786
        %v1808 = vpack.c.b16 %v1789, %v1788
        %v1809 = vpack.c.b16 %v1791, %v1790
        %v1810 = vpack.c.b16 %v1793, %v1792
        %v1811 = vpack.c.b16 %v1795, %v1794
        %1828 = vmatpush.bf16.msra.mxu0 %v1803
        %1829 = vmatpush.bf16.msra.mxu0 %v1802
        %1830 = vmatpush.bf16.msra.mxu0 %v1801
        %1831 = vmatpush.bf16.msra.mxu0 %v1800
        %1832 = vmatpush.bf16.msra.mxu0 %v1799
        %1833 = vmatpush.bf16.msra.mxu0 %v1798
        %1834 = vmatpush.bf16.msra.mxu0 %v1797
        %1835 = vmatpush.bf16.msra.mxu0 %v1796
        %1836 = vmatmul.bf16.gmra.mxu0 %v1700
        %v1837 = vpop.f32.mrf.mxu0
        %v1838 = vadd.f32 %v1613, %v1837
        %v1839 = vpop.f32.mrf.mxu0
        %v1840 = vadd.f32 %v1615, %v1839
        %1841 = vmatmul.bf16.gmra.mxu0 %v1702
        %v1842 = vpop.f32.mrf.mxu0
        %v1843 = vadd.f32 %v1618, %v1842
        %v1844 = vpop.f32.mrf.mxu0
        %v1845 = vadd.f32 %v1620, %v1844
        %1846 = vmatmul.bf16.gmra.mxu0 %v1704
        %v1847 = vpop.f32.mrf.mxu0
        %v1848 = vadd.f32 %v1623, %v1847
        %v1849 = vpop.f32.mrf.mxu0
        %v1850 = vadd.f32 %v1625, %v1849
        %1851 = vmatmul.bf16.gmra.mxu0 %v1706
        %v1852 = vpop.f32.mrf.mxu0
        %v1853 = vadd.f32 %v1628, %v1852
        %v1854 = vpop.f32.mrf.mxu0
        %v1855 = vadd.f32 %v1630, %v1854
        %1856 = vmatmul.bf16.gmra.mxu0 %v1708
        %v1857 = vpop.f32.mrf.mxu0
        %v1858 = vadd.f32 %v1633, %v1857
        %v1859 = vpop.f32.mrf.mxu0
        %v1860 = vadd.f32 %v1635, %v1859
        %1861 = vmatmul.bf16.gmra.mxu0 %v1710
        %v1862 = vpop.f32.mrf.mxu0
        %v1863 = vadd.f32 %v1638, %v1862
        %v1864 = vpop.f32.mrf.mxu0
        %v1865 = vadd.f32 %v1640, %v1864
        %1866 = vmatmul.bf16.gmra.mxu0 %v1712
        %v1867 = vpop.f32.mrf.mxu0
        %v1868 = vadd.f32 %v1643, %v1867
        %v1869 = vpop.f32.mrf.mxu0
        %v1870 = vadd.f32 %v1645, %v1869
        %1871 = vmatmul.bf16.gmra.mxu0 %v1714
        %v1872 = vpop.f32.mrf.mxu0
        %v1873 = vadd.f32 %v1648, %v1872
        %v1874 = vpop.f32.mrf.mxu0
        %v1875 = vadd.f32 %v1650, %v1874
        %1876 = vdwg.mxu0
        %1877 = vmatpush.bf16.msra.mxu0 %v1811
        %1878 = vmatpush.bf16.msra.mxu0 %v1810
        %1879 = vmatpush.bf16.msra.mxu0 %v1809
        %1880 = vmatpush.bf16.msra.mxu0 %v1808
        %1881 = vmatpush.bf16.msra.mxu0 %v1807
        %1882 = vmatpush.bf16.msra.mxu0 %v1806
        %1883 = vmatpush.bf16.msra.mxu0 %v1805
        %1884 = vmatpush.bf16.msra.mxu0 %v1804
        %1885 = vmatmul.bf16.gmra.mxu0 %v1701
        %v1886 = vpop.f32.mrf.mxu0
        %v1887 = vadd.f32 %v1838, %v1886
        %v1888 = vpop.f32.mrf.mxu0
        %v1889 = vadd.f32 %v1840, %v1888
        %1890 = vmatmul.bf16.gmra.mxu0 %v1703
        %v1891 = vpop.f32.mrf.mxu0
        %v1892 = vadd.f32 %v1843, %v1891
        %v1893 = vpop.f32.mrf.mxu0
        %v1894 = vadd.f32 %v1845, %v1893
        %1895 = vmatmul.bf16.gmra.mxu0 %v1705
        %v1896 = vpop.f32.mrf.mxu0
        %v1897 = vadd.f32 %v1848, %v1896
        %v1898 = vpop.f32.mrf.mxu0
        %v1899 = vadd.f32 %v1850, %v1898
        %1900 = vmatmul.bf16.gmra.mxu0 %v1707
        %v1901 = vpop.f32.mrf.mxu0
        %v1902 = vadd.f32 %v1853, %v1901
        %v1903 = vpop.f32.mrf.mxu0
        %v1904 = vadd.f32 %v1855, %v1903
        %1905 = vmatmul.bf16.gmra.mxu0 %v1709
        %v1906 = vpop.f32.mrf.mxu0
        %v1907 = vadd.f32 %v1858, %v1906
        %v1908 = vpop.f32.mrf.mxu0
        %v1909 = vadd.f32 %v1860, %v1908
        %1910 = vmatmul.bf16.gmra.mxu0 %v1711
        %v1911 = vpop.f32.mrf.mxu0
        %v1912 = vadd.f32 %v1863, %v1911
        %v1913 = vpop.f32.mrf.mxu0
        %v1914 = vadd.f32 %v1865, %v1913
        %1915 = vmatmul.bf16.gmra.mxu0 %v1713
        %v1916 = vpop.f32.mrf.mxu0
        %v1917 = vadd.f32 %v1868, %v1916
        %v1918 = vpop.f32.mrf.mxu0
        %v1919 = vadd.f32 %v1870, %v1918
        %1920 = vmatmul.bf16.gmra.mxu0 %v1715
        %v1921 = vpop.f32.mrf.mxu0
        %v1922 = vadd.f32 %v1873, %v1921
        %v1923 = vpop.f32.mrf.mxu0
        %v1924 = vadd.f32 %v1875, %v1923
        %1925 = vdwg.mxu0
        %v1926 = vpack.c.bf16 %v1887, %v1887
        %v1927 = vpack.c.bf16 %v1889, %v1889
        %v1928 = vpack.c.bf16 %v1892, %v1892
        %v1929 = vpack.c.bf16 %v1894, %v1894
        %v1930 = vpack.c.bf16 %v1897, %v1897
        %v1931 = vpack.c.bf16 %v1899, %v1899
        %v1932 = vpack.c.bf16 %v1902, %v1902
        %v1933 = vpack.c.bf16 %v1904, %v1904
        %v1934 = vpack.c.bf16 %v1907, %v1907
        %v1935 = vpack.c.bf16 %v1909, %v1909
        %v1936 = vpack.c.bf16 %v1912, %v1912
        %v1937 = vpack.c.bf16 %v1914, %v1914
        %v1938 = vpack.c.bf16 %v1917, %v1917
        %v1939 = vpack.c.bf16 %v1919, %v1919
        %v1940 = vpack.c.bf16 %v1922, %v1922
        %v1941 = vpack.c.bf16 %v1924, %v1924
        %1942 = vst [vmem:[%s423] sm:$0xf] %v1926
        %1943 = vst [vmem:[%s423 + $0x4] sm:$0xf] %v1927
        %1944 = vst [vmem:[%s423 + $0x8] sm:$0xf] %v1928
        %1945 = vst [vmem:[%s423 + $0xc] sm:$0xf] %v1929
        %1946 = vst [vmem:[%s423 + $0x10] sm:$0xf] %v1930
        %1947 = vst [vmem:[%s423 + $0x14] sm:$0xf] %v1931
        %1948 = vst [vmem:[%s423 + $0x18] sm:$0xf] %v1932
        %1949 = vst [vmem:[%s423 + $0x1c] sm:$0xf] %v1933
        %1950 = vst [vmem:[%s423 + $0x20] sm:$0xf] %v1934
        %1951 = vst [vmem:[%s423 + $0x24] sm:$0xf] %v1935
        %1952 = vst [vmem:[%s423 + $0x28] sm:$0xf] %v1936
        %1953 = vst [vmem:[%s423 + $0x2c] sm:$0xf] %v1937
        %1954 = vst [vmem:[%s423 + $0x30] sm:$0xf] %v1938
        %1955 = vst [vmem:[%s423 + $0x34] sm:$0xf] %v1939
        %1956 = vst [vmem:[%s423 + $0x38] sm:$0xf] %v1940
        %1957 = vst [vmem:[%s423 + $0x3c] sm:$0xf] %v1941
        %s1958 = sand.u32 %s197, 1
        %s1959 = scalar_lea.sflag [#allocation6], %s1958
        %s1960 = sand.u32 %s197, 1
        %s1961 = smul.addr %s1960, 64
        %s1962 = scalar_lea.vmem [#allocation13], %s1961
        // Predicated region
        $region69: #{tpu_custom_call.1} parent=43 // pred_check
          %p1963 = pneg %p207
        $region70: #{tpu_custom_call.1} parent=43 // pred_check_branch
          %1965 = sbr.rel (%p1963) target = $region72
        $region71: #{tpu_custom_call.1} parent=43 // pred_region
          %s1966 = smul.u32 16, %s33
          %1968 = vsyncadd %s1959, 0
          %s1969 = smul.addr %s1966, 2
          %s1970 = sadd.s32 %s34, %s1969
          %s1971 = smul.addr %s1970, 4
          %s1972 = scalar_lea.hbm %s6, %s1971
          %s1973 = sshll.u32 %s1962, 4
          %s1974 = int_to_ptr.vmem [resolvable:$true] %s1973
          %s1975 = sshll.u32 %s1972, 4
          %s1976 = int_to_ptr.hbm [resolvable:$true] %s1975
          %1981 = dma.vmem_to_hbm [thread:$0]  %s1974, 1024, %s1976, %s1959, 64, 128, 4
        $region72: #{tpu_custom_call.1} parent=43 // pred_fallthru
          _
      $region44: #{tpu_custom_call.1} parent=5 // pred_fallthru
        _
      %p1982 = scmp.le.s32.totalorder 2, %s24
      // Predicated region
      $region73: #{tpu_custom_call.1} parent=5 // pred_check
        %p1983 = pneg %p1982
      $region74: #{tpu_custom_call.1} parent=5 // pred_check_branch
        %1985 = sbr.rel (%p1983) target = $region76
      $region75: #{tpu_custom_call.1} parent=5 // pred_region
        %s1986 = ssub.s32 %s24, 2
        // Predicated region
        $region77: #{tpu_custom_call.1} parent=75 // pred_check
          %p1987 = pneg %p213
        $region78: #{tpu_custom_call.1} parent=75 // pred_check_branch
          %1989 = sbr.rel (%p1987) target = $region80
        $region79: #{tpu_custom_call.1} parent=75 // pred_region
          %s1990 = sand.u32 %s198, 1
          %s1991 = scalar_lea.sflag [#allocation6], %s1990
          %s1992 = sand.u32 %s198, 1
          %s1993 = smul.addr %s1992, 64
          %s1994 = scalar_lea.vmem [#allocation13], %s1993
          %1996 = dma.done %s1991, 1024
        $region80: #{tpu_custom_call.1} parent=75 // pred_fallthru
          _
      $region76: #{tpu_custom_call.1} parent=5 // pred_fallthru
        _
    $region6: #{tpu_custom_call.1} parent=1 // loop_footer
      %s28 = sadd.s32 1, %s24
    $region7: #{tpu_custom_call.1} parent=1 // loop_footer_branch
      %23 = sbr.rel target = $region3
    $region8: #{tpu_custom_call.1} parent=1 // loop_exit
      _
    %1997 = vsyncpa [#allocation5], 1
    %s1998 = scalar_lea.sflag [#allocation5], 1
    %1999 = vsyncpa %s1998, 1
    %2000 = vsyncpa [#allocation8], 1
    %s2001 = scalar_lea.sflag [#allocation8], 1
    %2002 = vsyncpa %s2001, 1
    %2003 = vsyncpa [#allocation11], 1
    %s2004 = scalar_lea.sflag [#allocation11], 1
    %2005 = vsyncpa %s2004, 1
    %2006 = vsyncpa [#allocation6], 1
    %s2007 = scalar_lea.sflag [#allocation6], 1
    %2008 = vsyncpa %s2007, 1

</llo_original>
